<compile_context>
chip_gen: v7x
topology: tpu7x:2x2x1
jax: 0.10.0
libtpu: 0.0.40
codegen_flags: <defaults>
</compile_context>

<pallas_src>
import functools

import jax
import jax.numpy as jnp
from jax.experimental import pallas as pl
from jax.experimental.pallas import tpu as pltpu


def _round_up(x, m):
    return (x + m - 1) // m * m


def _vmem_capacity_bytes():
    """Per-core VMEM capacity; conservative v7x default if the query fails."""
    try:
        cap = getattr(pltpu.get_tpu_info(), "vmem_capacity_bytes", None)
        if cap:
            return int(cap)
    except Exception:
        pass
    return 64 * 1024 * 1024  # v7x per-core VMEM (smallest of the targets)


def _convnet_kernel(Lpad, x_ref, w_ref, b_ref, mask_ref, fcw_ref, fcb_ref, out_ref):
    """One grid step = TB batch rows.

      x_ref    : (TB, Spad, E)      bf16  zero-padded embedded tokens
      w_ref    : (Kmax, E, nCoPad)  bf16  conv weights fused across branches, lane-padded
      b_ref    : (1, nCoPad)        f32   fused conv bias (lane-padded)
      mask_ref : (Lpad, nCoPad)     f32   1.0 where conv position is valid for that branch
      fcw_ref  : (nCoPad, NCpad)    bf16  FC weight, contraction + output dims padded
      fcb_ref  : (1, NCpad)         f32   FC bias, lane-padded
      out_ref  : (TB, NCpad)        f32   sigmoid(logits), lane-dense store
    """
    TB, Spad, E = x_ref.shape
    Kmax, _, nCoPad = w_ref.shape
    M = TB * Lpad

    # Fused conv: for each tap, one (M, E) @ (E, 128) bf16 x bf16 dot (all
    # branches at once) on the native MXU path, accumulated in f32.  Slices are
    # taken straight off the bf16 ref inside the tiny, static, unrolled loop
    # (no full-block f32 upcast -> half the vreg/VMEM pressure).
    # TODO(synk): if a bundle dump shows this MXU-bound with small E, im2col the
    # Kmax taps along the lane axis into one (M, Kmax*E) @ (Kmax*E, 128) dot.
    acc = jnp.zeros((M, nCoPad), jnp.float32)
    for k in range(Kmax):
        xk = x_ref[:, k:k + Lpad, :].reshape(M, E)          # bf16, no upcast
        acc += jnp.dot(xk, w_ref[k], preferred_element_type=jnp.float32)
    acc = jnp.maximum(acc + b_ref[...], 0.0)                # bias + ReLU (f32)

    # Zero out positions past each branch's valid conv length L_i = S - K_i + 1
    # using the precomputed, grid-invariant (Lpad, nCoPad) mask, then max-pool
    # over time.  ReLU output >= 0, so masking to 0 is exact.
    acc3 = acc.reshape(TB, Lpad, nCoPad) * mask_ref[...]
    pooled = jnp.max(acc3, axis=1)                          # (TB, nCoPad)

    # TODO(synk): nn.Dropout is identity in eval mode; training-mode dropout
    # would use pltpu.prng_seed + pltpu.prng_random_bits here.
    logit = jnp.dot(pooled.astype(jnp.bfloat16), fcw_ref[...],
                    preferred_element_type=jnp.float32) + fcb_ref[...]
    out_ref[...] = jax.nn.sigmoid(logit)                    # lane-dense (TB, 128) store


def convnet_forward(tokens, embedding, conv_ws, conv_bs, fcw, fcb, Ks, *, tb=None):
    """tokens: (B, S) int32; embedding: (V, E). Returns (B, num_class) f32."""
    B, S = tokens.shape
    E = embedding.shape[1]
    Co = conv_ws[0].shape[2]
    num_class = fcw.shape[1]
    n = len(Ks)
    nCo = n * Co
    Kmin, Kmax = min(Ks), max(Ks)

    Lmax = S - Kmin + 1                            # longest branch conv output
    Lpad = _round_up(Lmax, 8)                      # shared, sublane-aligned conv length
    Spad = _round_up(Lpad + Kmax - 1, 8)           # seq padding so every tap slice fits
    nCoPad = _round_up(max(nCo, 128), 128)         # lane-dense channel axis
    NCpad = _round_up(max(num_class, 128), 128)    # lane-dense output

    # --- batch tile: size from VMEM (per generation), keep >= 2 grid steps ---
    vmem_cap = _vmem_capacity_bytes()
    vmem_budget = int(vmem_cap * 0.75)             # ~48 MiB on v7x, ~96 MiB on v5e/v6e
    # per-row bytes: double-buffered bf16 x tile + f32 conv accumulator
    # + double-buffered f32 out tile (grid-invariant constants are tiny).
    per_row = 2 * Spad * E * 2 + Lpad * nCoPad * 4 + 2 * NCpad * 4
    if tb is None:
        tb = min(512, max(8, vmem_budget // max(per_row, 1)))
        tb = min(tb, max(8, _round_up(pl.cdiv(B, 2), 8)))   # keep >= 2 grid steps
    tb = _round_up(max(8, int(tb)), 8)
    Bpad = _round_up(B, tb)
    if Bpad // tb < 2:                             # feed both TensorCores on v7x
        Bpad = 2 * tb
    grid = (Bpad // tb,)

    # --- glue: embedding gather directly in bf16 (halves HBM glue traffic) ---
    tokens_p = jnp.pad(tokens, ((0, Bpad - B), (0, 0)))
    x = jnp.take(embedding.astype(jnp.bfloat16), tokens_p, axis=0)   # (Bpad, S, E) bf16
    x = jnp.pad(x, ((0, 0), (0, Spad - S), (0, 0)))

    # --- fuse the n conv branches into one lane-padded bf16 weight -----------
    w_packed = jnp.zeros((Kmax, E, nCoPad), jnp.float32)
    for i, (K, W) in enumerate(zip(Ks, conv_ws)):
        w_packed = w_packed.at[:K, :, i * Co:(i + 1) * Co].set(W.astype(jnp.float32))
    w_packed = w_packed.astype(jnp.bfloat16)
    b_packed = jnp.zeros((1, nCoPad), jnp.float32)
    for i, bvec in enumerate(conv_bs):
        b_packed = b_packed.at[:, i * Co:(i + 1) * Co].set(bvec.reshape(1, Co))

    # Grid-invariant validity mask: position p is valid for branch i iff
    # p < S - K_i + 1 (and channel < n*Co).  Built once on the host.
    pos = jnp.arange(Lpad)[:, None]
    cid = jnp.arange(nCoPad)[None, :]
    mask = jnp.zeros((Lpad, nCoPad), jnp.float32)
    for i, K in enumerate(Ks):
        branch = (cid >= i * Co) & (cid < (i + 1) * Co)
        mask = jnp.where(branch & (pos < (S - K + 1)), 1.0, mask)

    fcw_p = jnp.zeros((nCoPad, NCpad), jnp.float32).at[:nCo, :num_class].set(fcw)
    fcw_p = fcw_p.astype(jnp.bfloat16)
    fcb_p = jnp.zeros((1, NCpad), jnp.float32).at[:, :num_class].set(
        fcb.reshape(1, num_class))

    kernel = functools.partial(_convnet_kernel, Lpad)

    flops = 2 * Bpad * Lpad * Kmax * E * nCoPad + 2 * Bpad * nCoPad * NCpad
    bytes_accessed = (x.size * 2 + w_packed.size * 2 + b_packed.size * 4
                      + mask.size * 4 + fcw_p.size * 2 + fcb_p.size * 4
                      + Bpad * NCpad * 4)
    cost = pl.CostEstimate(flops=int(flops), transcendentals=int(Bpad * NCpad),
                           bytes_accessed=int(bytes_accessed))

    const = dict(pipeline_mode=pl.Buffered(1))     # grid-invariant: single buffer
    out = pl.pallas_call(
        kernel,
        out_shape=jax.ShapeDtypeStruct((Bpad, NCpad), jnp.float32),
        grid_spec=pltpu.PrefetchScalarGridSpec(
            num_scalar_prefetch=0,
            grid=grid,
            in_specs=[
                # TODO(synk): on v5e, if xprof shows exposed x DMA per step,
                # raise this to pipeline_mode=pl.Buffered(3).
                pl.BlockSpec((tb, Spad, E), lambda b: (b, 0, 0)),        # batch-tiled x
                pl.BlockSpec((Kmax, E, nCoPad), lambda b: (0, 0, 0), **const),  # conv W
                pl.BlockSpec((1, nCoPad), lambda b: (0, 0), **const),           # conv b
                pl.BlockSpec((Lpad, nCoPad), lambda b: (0, 0), **const),        # mask
                pl.BlockSpec((nCoPad, NCpad), lambda b: (0, 0), **const),       # FC W
                pl.BlockSpec((1, NCpad), lambda b: (0, 0), **const),            # FC b
            ],
            out_specs=pl.BlockSpec((tb, NCpad), lambda b: (b, 0)),
        ),
        compiler_params=pltpu.CompilerParams(
            dimension_semantics=("parallel",),
            vmem_limit_bytes=vmem_budget),
        cost_estimate=cost,
    )(x, w_packed, b_packed, mask, fcw_p, fcb_p)

    return out[:B, :num_class]


def reference_forward(tokens, embedding, conv_ws, conv_bs, fcw, fcb, Ks):
    x = jnp.take(embedding, tokens, axis=0).astype(jnp.float32)  # (B, S, E)
    S = x.shape[1]
    feats = []
    for K, W, bvec in zip(Ks, conv_ws, conv_bs):
        L = S - K + 1
        out = jnp.zeros((x.shape[0], L, W.shape[2]), jnp.float32)
        for k in range(K):
            out += jnp.einsum('bse,ec->bsc', x[:, k:k + L, :], W[k])
        out = jax.nn.relu(out + bvec)
        feats.append(out.max(axis=1))
    f = jnp.concatenate(feats, axis=1)
    return jax.nn.sigmoid(f @ fcw + fcb[0])


if __name__ == "__main__":
    # Small shapes consistent with the module's forward.
    B, S = 2, 16          # batch, sequence length
    V, E = 50, 32         # vocab size, embedding dim (weights_matrix shape)
    Co = 8                # args['kernel_num']
    Ks = (3, 4, 5)        # args['kernel_sizes']
    num_class = 4         # args['num_class']

    key = jax.random.PRNGKey(0)
    k_tok, k_emb, k_fcw, k_fcb, *k_convs = jax.random.split(key, 4 + 2 * len(Ks))

    tokens = jax.random.randint(k_tok, (B, S), 0, V, dtype=jnp.int32)
    embedding = jax.random.normal(k_emb, (V, E), jnp.float32) * 0.5

    conv_ws, conv_bs = [], []
    for i, K in enumerate(Ks):
        kw, kb = k_convs[2 * i], k_convs[2 * i + 1]
        conv_ws.append(jax.random.normal(kw, (K, E, Co), jnp.float32) * 0.1)
        conv_bs.append(jax.random.normal(kb, (1, Co), jnp.float32) * 0.1)

    fcw = jax.random.normal(k_fcw, (len(Ks) * Co, num_class), jnp.float32) * 0.1
    fcb = jax.random.normal(k_fcb, (1, num_class), jnp.float32) * 0.1

    out = convnet_forward(tokens, embedding, conv_ws, conv_bs, fcw, fcb, Ks)
    out = jax.block_until_ready(out)

    ref = reference_forward(tokens, embedding, conv_ws, conv_bs, fcw, fcb, Ks)
    assert out.shape == (B, num_class)
    # bf16 activations + bf16 weights on the MXU -> tolerance loosened vs f32 ref.
    assert jnp.allclose(out, ref, atol=1e-2, rtol=1e-2), (out, ref)
    print("KERNEL_OK")
</pallas_src>

<mosaic_0001>
module attributes {stable_mosaic.version = 11 : i64} {
  func.func @_convnet_kernel(%arg0: i32, %arg1: memref<8x24x32xbf16, #tpu.memory_space<vmem>>, %arg2: memref<5x32x128xbf16, #tpu.memory_space<vmem>>, %arg3: memref<1x128xf32, #tpu.memory_space<vmem>>, %arg4: memref<16x128xf32, #tpu.memory_space<vmem>>, %arg5: memref<128x128xbf16, #tpu.memory_space<vmem>>, %arg6: memref<1x128xf32, #tpu.memory_space<vmem>>, %arg7: memref<8x128xf32, #tpu.memory_space<vmem>>) attributes {dimension_semantics = [#tpu.dimension_semantics<parallel>], iteration_bounds = array<i64: 2>, scalar_prefetch = 0 : i64, scratch_operands = 0 : i64, tpu.core_type = #tpu.core_type<tc>, window_params = [{transform_indices = @transform_0, window_bounds = array<i64: 8, 24, 32>}, {pipeline_mode = #tpu.pipeline_mode<synchronous>, transform_indices = @transform_1, window_bounds = array<i64: 5, 32, 128>}, {pipeline_mode = #tpu.pipeline_mode<synchronous>, transform_indices = @transform_2, window_bounds = array<i64: 1, 128>}, {pipeline_mode = #tpu.pipeline_mode<synchronous>, transform_indices = @transform_3, window_bounds = array<i64: 16, 128>}, {pipeline_mode = #tpu.pipeline_mode<synchronous>, transform_indices = @transform_4, window_bounds = array<i64: 128, 128>}, {pipeline_mode = #tpu.pipeline_mode<synchronous>, transform_indices = @transform_5, window_bounds = array<i64: 1, 128>}, {transform_indices = @transform_6, window_bounds = array<i64: 8, 128>}]} {
    %cst = arith.constant 0.000000e+00 : f32
    %0 = vector.broadcast %cst : f32 to vector<128x128xf32>
    %c0 = arith.constant 0 : index
    %c0_0 = arith.constant 0 : index
    %c0_1 = arith.constant 0 : index
    %1 = vector.load %arg1[%c0, %c0_0, %c0_1] : memref<8x24x32xbf16, #tpu.memory_space<vmem>>, vector<8x16x32xbf16>
    %2 = vector.shape_cast %1 : vector<8x16x32xbf16> to vector<128x32xbf16>
    %c0_2 = arith.constant 0 : index
    %c0_3 = arith.constant 0 : index
    %c0_4 = arith.constant 0 : index
    %3 = vector.load %arg2[%c0_2, %c0_3, %c0_4] : memref<5x32x128xbf16, #tpu.memory_space<vmem>>, vector<1x32x128xbf16>
    %4 = vector.shape_cast %3 : vector<1x32x128xbf16> to vector<32x128xbf16>
    %cst_5 = arith.constant dense<0.000000e+00> : vector<128x128xf32>
    %5 = tpu.matmul %2, %4, %cst_5 {dimension_numbers = #tpu.dot_dimension_numbers<[1], [0], [0], [1], [0, 0, 1, 1], [], []>} : vector<128x32xbf16>, vector<32x128xbf16>, vector<128x128xf32> -> vector<128x128xf32>
    %6 = arith.addf %0, %5 : vector<128x128xf32>
    %c0_6 = arith.constant 0 : index
    %c1 = arith.constant 1 : index
    %c0_7 = arith.constant 0 : index
    %7 = vector.load %arg1[%c0_6, %c1, %c0_7] : memref<8x24x32xbf16, #tpu.memory_space<vmem>>, vector<8x16x32xbf16>
    %8 = vector.shape_cast %7 : vector<8x16x32xbf16> to vector<128x32xbf16>
    %c1_8 = arith.constant 1 : index
    %c0_9 = arith.constant 0 : index
    %c0_10 = arith.constant 0 : index
    %9 = vector.load %arg2[%c1_8, %c0_9, %c0_10] : memref<5x32x128xbf16, #tpu.memory_space<vmem>>, vector<1x32x128xbf16>
    %10 = vector.shape_cast %9 : vector<1x32x128xbf16> to vector<32x128xbf16>
    %cst_11 = arith.constant dense<0.000000e+00> : vector<128x128xf32>
    %11 = tpu.matmul %8, %10, %cst_11 {dimension_numbers = #tpu.dot_dimension_numbers<[1], [0], [0], [1], [0, 0, 1, 1], [], []>} : vector<128x32xbf16>, vector<32x128xbf16>, vector<128x128xf32> -> vector<128x128xf32>
    %12 = arith.addf %6, %11 : vector<128x128xf32>
    %c0_12 = arith.constant 0 : index
    %c2 = arith.constant 2 : index
    %c0_13 = arith.constant 0 : index
    %13 = vector.load %arg1[%c0_12, %c2, %c0_13] : memref<8x24x32xbf16, #tpu.memory_space<vmem>>, vector<8x16x32xbf16>
    %14 = vector.shape_cast %13 : vector<8x16x32xbf16> to vector<128x32xbf16>
    %c2_14 = arith.constant 2 : index
    %c0_15 = arith.constant 0 : index
    %c0_16 = arith.constant 0 : index
    %15 = vector.load %arg2[%c2_14, %c0_15, %c0_16] : memref<5x32x128xbf16, #tpu.memory_space<vmem>>, vector<1x32x128xbf16>
    %16 = vector.shape_cast %15 : vector<1x32x128xbf16> to vector<32x128xbf16>
    %cst_17 = arith.constant dense<0.000000e+00> : vector<128x128xf32>
    %17 = tpu.matmul %14, %16, %cst_17 {dimension_numbers = #tpu.dot_dimension_numbers<[1], [0], [0], [1], [0, 0, 1, 1], [], []>} : vector<128x32xbf16>, vector<32x128xbf16>, vector<128x128xf32> -> vector<128x128xf32>
    %18 = arith.addf %12, %17 : vector<128x128xf32>
    %c0_18 = arith.constant 0 : index
    %c3 = arith.constant 3 : index
    %c0_19 = arith.constant 0 : index
    %19 = vector.load %arg1[%c0_18, %c3, %c0_19] : memref<8x24x32xbf16, #tpu.memory_space<vmem>>, vector<8x16x32xbf16>
    %20 = vector.shape_cast %19 : vector<8x16x32xbf16> to vector<128x32xbf16>
    %c3_20 = arith.constant 3 : index
    %c0_21 = arith.constant 0 : index
    %c0_22 = arith.constant 0 : index
    %21 = vector.load %arg2[%c3_20, %c0_21, %c0_22] : memref<5x32x128xbf16, #tpu.memory_space<vmem>>, vector<1x32x128xbf16>
    %22 = vector.shape_cast %21 : vector<1x32x128xbf16> to vector<32x128xbf16>
    %cst_23 = arith.constant dense<0.000000e+00> : vector<128x128xf32>
    %23 = tpu.matmul %20, %22, %cst_23 {dimension_numbers = #tpu.dot_dimension_numbers<[1], [0], [0], [1], [0, 0, 1, 1], [], []>} : vector<128x32xbf16>, vector<32x128xbf16>, vector<128x128xf32> -> vector<128x128xf32>
    %24 = arith.addf %18, %23 : vector<128x128xf32>
    %c0_24 = arith.constant 0 : index
    %c4 = arith.constant 4 : index
    %c0_25 = arith.constant 0 : index
    %25 = vector.load %arg1[%c0_24, %c4, %c0_25] : memref<8x24x32xbf16, #tpu.memory_space<vmem>>, vector<8x16x32xbf16>
    %26 = vector.shape_cast %25 : vector<8x16x32xbf16> to vector<128x32xbf16>
    %c4_26 = arith.constant 4 : index
    %c0_27 = arith.constant 0 : index
    %c0_28 = arith.constant 0 : index
    %27 = vector.load %arg2[%c4_26, %c0_27, %c0_28] : memref<5x32x128xbf16, #tpu.memory_space<vmem>>, vector<1x32x128xbf16>
    %28 = vector.shape_cast %27 : vector<1x32x128xbf16> to vector<32x128xbf16>
    %cst_29 = arith.constant dense<0.000000e+00> : vector<128x128xf32>
    %29 = tpu.matmul %26, %28, %cst_29 {dimension_numbers = #tpu.dot_dimension_numbers<[1], [0], [0], [1], [0, 0, 1, 1], [], []>} : vector<128x32xbf16>, vector<32x128xbf16>, vector<128x128xf32> -> vector<128x128xf32>
    %30 = arith.addf %24, %29 : vector<128x128xf32>
    %c0_30 = arith.constant 0 : index
    %c0_31 = arith.constant 0 : index
    %31 = vector.load %arg3[%c0_30, %c0_31] : memref<1x128xf32, #tpu.memory_space<vmem>>, vector<1x128xf32>
    %32 = vector.broadcast %31 : vector<1x128xf32> to vector<128x128xf32>
    %33 = arith.addf %30, %32 : vector<128x128xf32>
    %cst_32 = arith.constant 0.000000e+00 : f32
    %34 = vector.broadcast %cst_32 : f32 to vector<128x128xf32>
    %35 = arith.maximumf %33, %34 : vector<128x128xf32>
    %36 = vector.shape_cast %35 : vector<128x128xf32> to vector<8x16x128xf32>
    %c0_33 = arith.constant 0 : index
    %c0_34 = arith.constant 0 : index
    %37 = vector.load %arg4[%c0_33, %c0_34] : memref<16x128xf32, #tpu.memory_space<vmem>>, vector<16x128xf32>
    %38 = vector.shape_cast %37 : vector<16x128xf32> to vector<1x16x128xf32>
    %39 = vector.broadcast %38 : vector<1x16x128xf32> to vector<8x16x128xf32>
    %40 = arith.mulf %36, %39 : vector<8x16x128xf32>
    %cst_35 = arith.constant dense<0xFF800000> : vector<8x128xf32>
    %41 = vector.multi_reduction <maximumf>, %40, %cst_35 [1] : vector<8x16x128xf32> to vector<8x128xf32>
    %42 = arith.truncf %41 : vector<8x128xf32> to vector<8x128xbf16>
    %c0_36 = arith.constant 0 : index
    %c0_37 = arith.constant 0 : index
    %43 = vector.load %arg5[%c0_36, %c0_37] : memref<128x128xbf16, #tpu.memory_space<vmem>>, vector<128x128xbf16>
    %cst_38 = arith.constant dense<0.000000e+00> : vector<8x128xf32>
    %44 = tpu.matmul %42, %43, %cst_38 {dimension_numbers = #tpu.dot_dimension_numbers<[1], [0], [0], [1], [0, 0, 1, 1], [], []>} : vector<8x128xbf16>, vector<128x128xbf16>, vector<8x128xf32> -> vector<8x128xf32>
    %c0_39 = arith.constant 0 : index
    %c0_40 = arith.constant 0 : index
    %45 = vector.load %arg6[%c0_39, %c0_40] : memref<1x128xf32, #tpu.memory_space<vmem>>, vector<1x128xf32>
    %46 = vector.broadcast %45 : vector<1x128xf32> to vector<8x128xf32>
    %47 = arith.addf %44, %46 : vector<8x128xf32>
    %48 = arith.negf %47 : vector<8x128xf32>
    %49 = math.exp %48 : vector<8x128xf32>
    %cst_41 = arith.constant 1.000000e+00 : f32
    %50 = vector.broadcast %cst_41 : f32 to vector<8x128xf32>
    %51 = arith.addf %50, %49 : vector<8x128xf32>
    %52 = arith.divf %50, %51 : vector<8x128xf32>
    %c0_42 = arith.constant 0 : index
    %c0_43 = arith.constant 0 : index
    %53 = vector.load %arg7[%c0_42, %c0_43] : memref<8x128xf32, #tpu.memory_space<vmem>>, vector<8x128xf32>
    tpu.vector_store %arg7[%c0_42, %c0_43], %52 {strides = array<i32>} : memref<8x128xf32, #tpu.memory_space<vmem>>, vector<8x128xf32>,
    return
  }
  func.func @transform_0(%arg0: i32) -> (i32, i32, i32) {
    %c0_i32 = arith.constant 0 : i32
    %c0_i32_0 = arith.constant 0 : i32
    %c0_i32_1 = arith.constant 0 : i32
    return %arg0, %c0_i32, %c0_i32_0 : i32, i32, i32
  }
  func.func @transform_1(%arg0: i32) -> (i32, i32, i32) {
    %c0_i32 = arith.constant 0 : i32
    %c0_i32_0 = arith.constant 0 : i32
    %c0_i32_1 = arith.constant 0 : i32
    %c0_i32_2 = arith.constant 0 : i32
    return %c0_i32, %c0_i32_0, %c0_i32_1 : i32, i32, i32
  }
  func.func @transform_2(%arg0: i32) -> (i32, i32) {
    %c0_i32 = arith.constant 0 : i32
    %c0_i32_0 = arith.constant 0 : i32
    %c0_i32_1 = arith.constant 0 : i32
    return %c0_i32, %c0_i32_0 : i32, i32
  }
  func.func @transform_3(%arg0: i32) -> (i32, i32) {
    %c0_i32 = arith.constant 0 : i32
    %c0_i32_0 = arith.constant 0 : i32
    %c0_i32_1 = arith.constant 0 : i32
    return %c0_i32, %c0_i32_0 : i32, i32
  }
  func.func @transform_4(%arg0: i32) -> (i32, i32) {
    %c0_i32 = arith.constant 0 : i32
    %c0_i32_0 = arith.constant 0 : i32
    %c0_i32_1 = arith.constant 0 : i32
    return %c0_i32, %c0_i32_0 : i32, i32
  }
  func.func @transform_5(%arg0: i32) -> (i32, i32) {
    %c0_i32 = arith.constant 0 : i32
    %c0_i32_0 = arith.constant 0 : i32
    %c0_i32_1 = arith.constant 0 : i32
    return %c0_i32, %c0_i32_0 : i32, i32
  }
  func.func @transform_6(%arg0: i32) -> (i32, i32) {
    %c0_i32 = arith.constant 0 : i32
    %c0_i32_0 = arith.constant 0 : i32
    return %arg0, %c0_i32 : i32, i32
  }
}

</mosaic_0001>

<llo_original>
// kernel: tpu_custom_call.1
$region0: #{tpu_custom_call.1}
  #allocation0 [shape = 'u32[]', space=smem, size = 0x4, offset = 0x4, fixed_abs, tag = 'smem constant byte address 0x4 - core index']
  #allocation1 [shape = 'u32[144,128]{1,0:T(1,128)}', space=vmem, size = 0x12000, scoped, tag = 'internal scratch']
  %s0 = inlined_call_operand.hbm [shape: bf16[16,24,32], index: 0, kind: input, shape index: {}]
  %s1 = inlined_call_operand.hbm [shape: bf16[5,32,128], index: 1, kind: input, shape index: {}]
  %s2 = inlined_call_operand.vmem [shape: f32[1,128], index: 2, kind: input, shape index: {}]
  %s3 = inlined_call_operand.hbm [shape: f32[16,128], index: 3, kind: input, shape index: {}]
  %s4 = inlined_call_operand.hbm [shape: bf16[128,128], index: 4, kind: input, shape index: {}]
  %s5 = inlined_call_operand.vmem [shape: f32[1,128], index: 5, kind: input, shape index: {}]
  %s6 = inlined_call_operand.hbm [shape: f32[16,128], index: 6, kind: output, shape index: {}]
  %s7 = sld [smem:[#allocation0]]
  $region73: #{tpu_custom_call.1} parent=0
    _
  %s9 = ssub.s32 1, %s7
  %s10 = scalar_select 0, %s9, %s7
  $region1: #{tpu_custom_call.1} parent=0
    #allocation2 [shape = 'u8[98304]{0}', space=vmem, size = 0x18000, scoped, tag = 'input window, operand 0']
    #allocation3 [shape = 's32[2]{0}', space=sflag, size = 0x8, scoped, tag = 'scoped memory for tpu_custom_call.1']
    #allocation4 [shape = 's32[2]{0}', space=sflag, size = 0x8, scoped, tag = 'scoped memory for tpu_custom_call.1']
    #allocation5 [shape = 'u8[40960]{0}', space=vmem, size = 0xa000, scoped, tag = 'input window, operand 1, single buffered']
    #allocation6 [shape = 's32[1]{0}', space=sflag, size = 0x4, scoped, tag = 'scoped memory for tpu_custom_call.1']
    #allocation7 [shape = 'u8[8192]{0}', space=vmem, size = 0x2000, scoped, tag = 'input window, operand 3, single buffered']
    #allocation8 [shape = 'u8[32768]{0}', space=vmem, size = 0x8000, scoped, tag = 'input window, operand 4, single buffered']
    #allocation9 [shape = 's32[1]{0}', space=sflag, size = 0x4, scoped, tag = 'scoped memory for tpu_custom_call.1']
    #allocation10 [shape = 'u8[8192]{0}', space=vmem, size = 0x2000, scoped, tag = 'output window, operand 0']
    %11 = vsyncpa [#allocation3], 0
    %s12 = scalar_lea.sflag [#allocation3], 1
    %13 = vsyncpa %s12, 0
    %14 = vsyncpa [#allocation6], 0
    %15 = vsyncpa [#allocation9], 0
    %16 = vsyncpa [#allocation4], 0
    %s17 = scalar_lea.sflag [#allocation4], 1
    %18 = vsyncpa %s17, 0
    loop: start=0, step=1, limit=4
    $region2: #{tpu_custom_call.1} parent=1 // loop_pre_header
      _
    $region3: #{tpu_custom_call.1} parent=1 // loop_header
      %s20 = sphi 0, %s24
      %p21 = scmp.ge.s32.totalorder %s20, 4
      %s30 = sphi 0, %s32
      %s33 = sphi 0, %s30
      %s34 = sphi 0, %s33
      %s50 = sphi 0, %s34
      %s54 = sphi 0, %s54
      %s56 = sphi 0, %s54
      %s57 = sphi 0, %s56
      %s71 = sphi 0, %s57
      %s75 = sphi 0, %s75
      %s77 = sphi 0, %s75
      %s78 = sphi 0, %s77
      %s92 = sphi 0, %s78
      %s96 = sphi 0, %s96
      %s98 = sphi 0, %s96
      %s99 = sphi 0, %s98
      %s113 = sphi 0, %s99
      %s117 = sphi 0, %s117
      %s119 = sphi 0, %s117
      %s120 = sphi 0, %s119
      %s134 = sphi 0, %s120
      %s138 = sphi 0, %s138
      %s140 = sphi 0, %s138
      %s141 = sphi 0, %s140
      %s155 = sphi 0, %s141
      %s161 = sphi 0, %s163
      %s164 = sphi 0, %s161
      %s165 = sphi 0, %s164
      %s181 = sphi 0, %s165
    $region4: #{tpu_custom_call.1} parent=1 // loop_header_branch
      %23 = sbr.rel (%p21) target = $region8
    $region5: #{tpu_custom_call.1} parent=1 // loop_body
      %s25 = ssub.s32 %s20, 1
      %s26 = ssub.s32 %s20, 2
      %s27 = sadd.s32 %s20, 1
      %s28 = ssub.s32 %s20, %s27
      %p29 = scmp.eq.s32.totalorder %s28, 0
      %s31 = sadd.s32 %s30, 1
      %s32 = scalar_select %p29, %s30, %s31
      %p35 = pneg %p29
      %p36 = scmp.eq.s32.totalorder %s20, 1
      %p37 = por %p35, %p36
      %p38 = scmp.ne.s32.totalorder %s30, %s33
      %p39 = scmp.eq.s32.totalorder %s20, 0
      %p40 = por %p38, %p39
      %p41 = scmp.ne.s32.totalorder %s30, %s33
      %p42 = scmp.eq.s32.totalorder %s25, 1
      %p43 = por %p41, %p42
      %p44 = scmp.ne.s32.totalorder %s33, %s34
      %p45 = scmp.eq.s32.totalorder %s25, 0
      %p46 = por %p44, %p45
      %p47 = scmp.ne.s32.totalorder %s33, %s34
      %p48 = scmp.eq.s32.totalorder %s26, 1
      %p49 = por %p47, %p48
      %p51 = scmp.ne.s32.totalorder %s34, %s50
      %p52 = scmp.eq.s32.totalorder %s26, 0
      %p53 = por %p51, %p52
      %s55 = sadd.s32 %s54, 1
      %p58 = scmp.eq.s32.totalorder %s20, 1
      %p59 = scmp.ne.s32.totalorder %s54, %s56
      %p60 = scmp.eq.s32.totalorder %s20, 0
      %p61 = por %p59, %p60
      %p62 = scmp.ne.s32.totalorder %s54, %s56
      %p63 = scmp.eq.s32.totalorder %s25, 1
      %p64 = por %p62, %p63
      %p65 = scmp.ne.s32.totalorder %s56, %s57
      %p66 = scmp.eq.s32.totalorder %s25, 0
      %p67 = por %p65, %p66
      %p68 = scmp.ne.s32.totalorder %s56, %s57
      %p69 = scmp.eq.s32.totalorder %s26, 1
      %p70 = por %p68, %p69
      %p72 = scmp.ne.s32.totalorder %s57, %s71
      %p73 = scmp.eq.s32.totalorder %s26, 0
      %p74 = por %p72, %p73
      %s76 = sadd.s32 %s75, 1
      %p79 = scmp.eq.s32.totalorder %s20, 1
      %p80 = scmp.ne.s32.totalorder %s75, %s77
      %p81 = scmp.eq.s32.totalorder %s20, 0
      %p82 = por %p80, %p81
      %p83 = scmp.ne.s32.totalorder %s75, %s77
      %p84 = scmp.eq.s32.totalorder %s25, 1
      %p85 = por %p83, %p84
      %p86 = scmp.ne.s32.totalorder %s77, %s78
      %p87 = scmp.eq.s32.totalorder %s25, 0
      %p88 = por %p86, %p87
      %p89 = scmp.ne.s32.totalorder %s77, %s78
      %p90 = scmp.eq.s32.totalorder %s26, 1
      %p91 = por %p89, %p90
      %p93 = scmp.ne.s32.totalorder %s78, %s92
      %p94 = scmp.eq.s32.totalorder %s26, 0
      %p95 = por %p93, %p94
      %s97 = sadd.s32 %s96, 1
      %p100 = scmp.eq.s32.totalorder %s20, 1
      %p101 = scmp.ne.s32.totalorder %s96, %s98
      %p102 = scmp.eq.s32.totalorder %s20, 0
      %p103 = por %p101, %p102
      %p104 = scmp.ne.s32.totalorder %s96, %s98
      %p105 = scmp.eq.s32.totalorder %s25, 1
      %p106 = por %p104, %p105
      %p107 = scmp.ne.s32.totalorder %s98, %s99
      %p108 = scmp.eq.s32.totalorder %s25, 0
      %p109 = por %p107, %p108
      %p110 = scmp.ne.s32.totalorder %s98, %s99
      %p111 = scmp.eq.s32.totalorder %s26, 1
      %p112 = por %p110, %p111
      %p114 = scmp.ne.s32.totalorder %s99, %s113
      %p115 = scmp.eq.s32.totalorder %s26, 0
      %p116 = por %p114, %p115
      %s118 = sadd.s32 %s117, 1
      %p121 = scmp.eq.s32.totalorder %s20, 1
      %p122 = scmp.ne.s32.totalorder %s117, %s119
      %p123 = scmp.eq.s32.totalorder %s20, 0
      %p124 = por %p122, %p123
      %p125 = scmp.ne.s32.totalorder %s117, %s119
      %p126 = scmp.eq.s32.totalorder %s25, 1
      %p127 = por %p125, %p126
      %p128 = scmp.ne.s32.totalorder %s119, %s120
      %p129 = scmp.eq.s32.totalorder %s25, 0
      %p130 = por %p128, %p129
      %p131 = scmp.ne.s32.totalorder %s119, %s120
      %p132 = scmp.eq.s32.totalorder %s26, 1
      %p133 = por %p131, %p132
      %p135 = scmp.ne.s32.totalorder %s120, %s134
      %p136 = scmp.eq.s32.totalorder %s26, 0
      %p137 = por %p135, %p136
      %s139 = sadd.s32 %s138, 1
      %p142 = scmp.eq.s32.totalorder %s20, 1
      %p143 = scmp.ne.s32.totalorder %s138, %s140
      %p144 = scmp.eq.s32.totalorder %s20, 0
      %p145 = por %p143, %p144
      %p146 = scmp.ne.s32.totalorder %s138, %s140
      %p147 = scmp.eq.s32.totalorder %s25, 1
      %p148 = por %p146, %p147
      %p149 = scmp.ne.s32.totalorder %s140, %s141
      %p150 = scmp.eq.s32.totalorder %s25, 0
      %p151 = por %p149, %p150
      %p152 = scmp.ne.s32.totalorder %s140, %s141
      %p153 = scmp.eq.s32.totalorder %s26, 1
      %p154 = por %p152, %p153
      %p156 = scmp.ne.s32.totalorder %s141, %s155
      %p157 = scmp.eq.s32.totalorder %s26, 0
      %p158 = por %p156, %p157
      %s159 = ssub.s32 %s20, %s27
      %p160 = scmp.eq.s32.totalorder %s159, 0
      %s162 = sadd.s32 %s161, 1
      %s163 = scalar_select %p160, %s161, %s162
      %p166 = pneg %p160
      %p167 = scmp.eq.s32.totalorder %s20, 1
      %p168 = por %p166, %p167
      %p169 = scmp.ne.s32.totalorder %s161, %s164
      %p170 = scmp.eq.s32.totalorder %s20, 0
      %p171 = por %p169, %p170
      %p172 = scmp.ne.s32.totalorder %s161, %s164
      %p173 = scmp.eq.s32.totalorder %s25, 1
      %p174 = por %p172, %p173
      %p175 = scmp.ne.s32.totalorder %s164, %s165
      %p176 = scmp.eq.s32.totalorder %s25, 0
      %p177 = por %p175, %p176
      %p178 = scmp.ne.s32.totalorder %s164, %s165
      %p179 = scmp.eq.s32.totalorder %s26, 1
      %p180 = por %p178, %p179
      %p182 = scmp.ne.s32.totalorder %s165, %s181
      %p183 = scmp.eq.s32.totalorder %s26, 0
      %p184 = por %p182, %p183
      %p185 = scmp.le.s32.totalorder 1, %s20
      %p186 = scmp.lt.s32.totalorder %s20, 3
      %p187 = pnand %p185, %p186
      %p188 = pneg %p187
      // Predicated region
      $region9: #{tpu_custom_call.1} parent=5 // pred_check
        _
      $region10: #{tpu_custom_call.1} parent=5 // pred_check_branch
        %190 = sbr.rel (%p187) target = $region12
      $region11: #{tpu_custom_call.1} parent=5 // pred_region
        %s191 = ssub.s32 %s20, 1
        // Predicated region
        $region13: #{tpu_custom_call.1} parent=11 // pred_check
          %p192 = pneg %p67
        $region14: #{tpu_custom_call.1} parent=11 // pred_check_branch
          %194 = sbr.rel (%p192) target = $region16
        $region15: #{tpu_custom_call.1} parent=11 // pred_region
          %s196 = ssub.s32 1280, 1280
          %197 = vsyncadd [#allocation6], %s196
          %s198 = sshll.u32 [#allocation5], 4
          %s199 = int_to_ptr.vmem [resolvable:$true] %s198
          %204 = dma.hbm_to_vmem [thread:$0]  %s1, 1280, %s199, [#allocation6], 64, 64, 4
        $region16: #{tpu_custom_call.1} parent=11 // pred_fallthru
          _
        // Predicated region
        $region17: #{tpu_custom_call.1} parent=11 // pred_check
          %p205 = pneg %p88
        $region18: #{tpu_custom_call.1} parent=11 // pred_check_branch
          %207 = sbr.rel (%p205) target = $region20
        $region19: #{tpu_custom_call.1} parent=11 // pred_region
          _
        $region20: #{tpu_custom_call.1} parent=11 // pred_fallthru
          _
        // Predicated region
        $region21: #{tpu_custom_call.1} parent=11 // pred_check
          %p208 = pneg %p109
        $region22: #{tpu_custom_call.1} parent=11 // pred_check_branch
          %210 = sbr.rel (%p208) target = $region24
        $region23: #{tpu_custom_call.1} parent=11 // pred_region
          %s212 = ssub.s32 256, 256
          %213 = vsyncadd [#allocation6], %s212
          %s214 = sshll.u32 [#allocation7], 4
          %s215 = int_to_ptr.vmem [resolvable:$true] %s214
          %220 = dma.hbm_to_vmem [thread:$0]  %s3, 256, %s215, [#allocation6], 128, 128, 8
        $region24: #{tpu_custom_call.1} parent=11 // pred_fallthru
          _
        // Predicated region
        $region25: #{tpu_custom_call.1} parent=11 // pred_check
          %p221 = pneg %p130
        $region26: #{tpu_custom_call.1} parent=11 // pred_check_branch
          %223 = sbr.rel (%p221) target = $region28
        $region27: #{tpu_custom_call.1} parent=11 // pred_region
          %s225 = ssub.s32 1024, 1024
          %226 = vsyncadd [#allocation9], %s225
          %s227 = sshll.u32 [#allocation8], 4
          %s228 = int_to_ptr.vmem [resolvable:$true] %s227
          %233 = dma.hbm_to_vmem [thread:$0]  %s4, 1024, %s228, [#allocation9], 64, 64, 4
        $region28: #{tpu_custom_call.1} parent=11 // pred_fallthru
          _
        // Predicated region
        $region29: #{tpu_custom_call.1} parent=11 // pred_check
          %p234 = pneg %p151
        $region30: #{tpu_custom_call.1} parent=11 // pred_check_branch
          %236 = sbr.rel (%p234) target = $region32
        $region31: #{tpu_custom_call.1} parent=11 // pred_region
          _
        $region32: #{tpu_custom_call.1} parent=11 // pred_fallthru
          _
      $region12: #{tpu_custom_call.1} parent=5 // pred_fallthru
        _
      %p237 = scmp.lt.s32.totalorder %s20, 2
      // Predicated region
      $region33: #{tpu_custom_call.1} parent=5 // pred_check
        %p238 = pneg %p237
      $region34: #{tpu_custom_call.1} parent=5 // pred_check_branch
        %240 = sbr.rel (%p238) target = $region36
      $region35: #{tpu_custom_call.1} parent=5 // pred_region
        // Predicated region
        $region37: #{tpu_custom_call.1} parent=35 // pred_check
          %p241 = pneg %p40
        $region38: #{tpu_custom_call.1} parent=35 // pred_check_branch
          %243 = sbr.rel (%p241) target = $region40
        $region39: #{tpu_custom_call.1} parent=35 // pred_region
          %s244 = sand.u32 %s30, 1
          %s245 = scalar_lea.sflag [#allocation3], %s244
          %s246 = sand.u32 %s30, 1
          %s247 = smul.addr %s246, 96
          %s248 = scalar_lea.vmem [#allocation2], %s247
          %s249 = smul.u32 8, %s20
          %s251 = ssub.s32 1536, 1536
          %252 = vsyncadd %s245, %s251
          %s253 = smul.addr %s249, 3
          %s254 = smul.addr %s253, 64
          %s255 = scalar_lea.hbm %s0, %s254
          %s256 = sshll.u32 %s248, 4
          %s257 = int_to_ptr.vmem [resolvable:$true] %s256
          %262 = dma.hbm_to_vmem [thread:$0]  %s255, 1536, %s257, %s245, 64, 64, 4
        $region40: #{tpu_custom_call.1} parent=35 // pred_fallthru
          _
      $region36: #{tpu_custom_call.1} parent=5 // pred_fallthru
        _
      %p263 = scmp.le.s32.totalorder 1, %s20
      %p264 = scmp.lt.s32.totalorder %s20, 3
      %p265 = pnand %p263, %p264
      %p266 = pneg %p265
      // Predicated region
      $region41: #{tpu_custom_call.1} parent=5 // pred_check
        _
      $region42: #{tpu_custom_call.1} parent=5 // pred_check_branch
        %268 = sbr.rel (%p265) target = $region44
      $region43: #{tpu_custom_call.1} parent=5 // pred_region
        %s269 = ssub.s32 %s20, 1
        %s270 = sand.u32 %s33, 1
        %s271 = scalar_lea.sflag [#allocation3], %s270
        %s272 = sand.u32 %s33, 1
        %s273 = smul.addr %s272, 96
        %s274 = scalar_lea.vmem [#allocation2], %s273
        // Predicated region
        $region45: #{tpu_custom_call.1} parent=43 // pred_check
          %p275 = pneg %p46
        $region46: #{tpu_custom_call.1} parent=43 // pred_check_branch
          %277 = sbr.rel (%p275) target = $region48
        $region47: #{tpu_custom_call.1} parent=43 // pred_region
          %278 = dma.done %s271, 1536
        $region48: #{tpu_custom_call.1} parent=43 // pred_fallthru
          _
        // Predicated region
        $region49: #{tpu_custom_call.1} parent=43 // pred_check
          %p279 = pneg %p67
        $region50: #{tpu_custom_call.1} parent=43 // pred_check_branch
          %281 = sbr.rel (%p279) target = $region52
        $region51: #{tpu_custom_call.1} parent=43 // pred_region
          %282 = dma.done [#allocation6], 1280
        $region52: #{tpu_custom_call.1} parent=43 // pred_fallthru
          _
        // Predicated region
        $region53: #{tpu_custom_call.1} parent=43 // pred_check
          %p283 = pneg %p109
        $region54: #{tpu_custom_call.1} parent=43 // pred_check_branch
          %285 = sbr.rel (%p283) target = $region56
        $region55: #{tpu_custom_call.1} parent=43 // pred_region
          %286 = dma.done [#allocation6], 256
        $region56: #{tpu_custom_call.1} parent=43 // pred_fallthru
          _
        // Predicated region
        $region57: #{tpu_custom_call.1} parent=43 // pred_check
          %p287 = pneg %p130
        $region58: #{tpu_custom_call.1} parent=43 // pred_check_branch
          %289 = sbr.rel (%p287) target = $region60
        $region59: #{tpu_custom_call.1} parent=43 // pred_region
          %290 = dma.done [#allocation9], 1024
        $region60: #{tpu_custom_call.1} parent=43 // pred_fallthru
          _
        %s291 = sand.u32 %s33, 1
        %s292 = scalar_lea.sflag [#allocation3], %s291
        %s293 = sand.u32 %s33, 1
        %s294 = smul.addr %s293, 96
        %s295 = scalar_lea.vmem [#allocation2], %s294
        %p296 = pneg %p46
        %p297 = pneg %p43
        %p298 = pneg %p67
        %p299 = pneg %p64
        %p300 = pneg %p88
        %p301 = pneg %p85
        %p302 = pneg %p109
        %p303 = pneg %p106
        %p304 = pneg %p130
        %p305 = pneg %p127
        %p306 = pneg %p151
        %p307 = pneg %p148
        %p308 = pneg %p177
        %p309 = pneg %p174
        %s310 = sand.u32 %s164, 1
        %s311 = scalar_lea.sflag [#allocation4], %s310
        %s312 = sand.u32 %s164, 1
        %s313 = smul.addr %s312, 8
        %s314 = scalar_lea.vmem [#allocation10], %s313
        %s315 = smul.u32 8, %s25
        %v317 = vld [vmem:[%s274] sm:$0xf]
        %v318 = vld [vmem:[%s274 + $0x4] sm:$0xf]
        %v319 = vld [vmem:[%s274 + $0xc] sm:$0xf]
        %v320 = vld [vmem:[%s274 + $0x10] sm:$0xf]
        %v321 = vld [vmem:[%s274 + $0x18] sm:$0xf]
        %v322 = vld [vmem:[%s274 + $0x1c] sm:$0xf]
        %v323 = vld [vmem:[%s274 + $0x24] sm:$0xf]
        %v324 = vld [vmem:[%s274 + $0x28] sm:$0xf]
        %v325 = vld [vmem:[%s274 + $0x30] sm:$0xf]
        %v326 = vld [vmem:[%s274 + $0x34] sm:$0xf]
        %v327 = vld [vmem:[%s274 + $0x3c] sm:$0xf]
        %v328 = vld [vmem:[%s274 + $0x40] sm:$0xf]
        %v329 = vld [vmem:[%s274 + $0x48] sm:$0xf]
        %v330 = vld [vmem:[%s274 + $0x4c] sm:$0xf]
        %v331 = vld [vmem:[%s274 + $0x54] sm:$0xf]
        %v332 = vld [vmem:[%s274 + $0x58] sm:$0xf]
        %v333 = vld [vmem:[#allocation5] sm:$0xf]
        %v334 = vld [vmem:[#allocation5 + $0x4] sm:$0xf]
        %v335 = vld [vmem:[#allocation5 + $0x8] sm:$0xf]
        %v336 = vld [vmem:[#allocation5 + $0xc] sm:$0xf]
        %v337 = vld [vmem:[%s274 + $0x8] sm:$0x1]
        %v338 = vld [vmem:[%s274 + $0x14] sm:$0x1]
        %v339 = vld [vmem:[%s274 + $0x20] sm:$0x1]
        %v340 = vld [vmem:[%s274 + $0x2c] sm:$0x1]
        %v341 = vld [vmem:[%s274 + $0x38] sm:$0x1]
        %v342 = vld [vmem:[%s274 + $0x44] sm:$0x1]
        %v343 = vld [vmem:[%s274 + $0x50] sm:$0x1]
        %v344 = vld [vmem:[%s274 + $0x5c] sm:$0x1]
        %vm345 = vsmask.f32 3328
        %vm346 = vsmask.f32 7440
        %vm347 = vmor %vm345, %vm346
        %v349 = vshrl.u32 %v317, 16
        %v351 = vrot.slane %v349, 4
        %v352 = vshll.u32 %v317, 16
        %v354 = vrot.slane %v352, 5
        %v355 = vor.u32 %v351, %v354
        %v356 = vrot.slane %v355, 4
        %v358 = vshll.u32 %v318, 16
        %v360 = vrot.slane %v358, 5
        %v361 = vsel %vm347, %v356, %v360
        %v362 = vshrl.u32 %v318, 16
        %v364 = vrot.slane %v362, 4
        %v365 = vor.u32 %v364, %v360
        %v366 = vrot.slane %v365, 4
        %v368 = vshll.u32 %v337, 16
        %v370 = vrot.slane %v368, 5
        %v371 = vsel %vm347, %v366, %v370
        %v373 = vshrl.u32 %v319, 16
        %v375 = vrot.slane %v373, 4
        %v376 = vshll.u32 %v319, 16
        %v378 = vrot.slane %v376, 5
        %v379 = vor.u32 %v375, %v378
        %v380 = vrot.slane %v379, 4
        %v382 = vshll.u32 %v320, 16
        %v384 = vrot.slane %v382, 5
        %v385 = vsel %vm347, %v380, %v384
        %v386 = vshrl.u32 %v320, 16
        %v388 = vrot.slane %v386, 4
        %v389 = vor.u32 %v388, %v384
        %v390 = vrot.slane %v389, 4
        %v392 = vshll.u32 %v338, 16
        %v394 = vrot.slane %v392, 5
        %v395 = vsel %vm347, %v390, %v394
        %v397 = vshrl.u32 %v321, 16
        %v399 = vrot.slane %v397, 4
        %v400 = vshll.u32 %v321, 16
        %v402 = vrot.slane %v400, 5
        %v403 = vor.u32 %v399, %v402
        %v404 = vrot.slane %v403, 4
        %v406 = vshll.u32 %v322, 16
        %v408 = vrot.slane %v406, 5
        %v409 = vsel %vm347, %v404, %v408
        %v410 = vshrl.u32 %v322, 16
        %v412 = vrot.slane %v410, 4
        %v413 = vor.u32 %v412, %v408
        %v414 = vrot.slane %v413, 4
        %v416 = vshll.u32 %v339, 16
        %v418 = vrot.slane %v416, 5
        %v419 = vsel %vm347, %v414, %v418
        %v421 = vshrl.u32 %v323, 16
        %v423 = vrot.slane %v421, 4
        %v424 = vshll.u32 %v323, 16
        %v426 = vrot.slane %v424, 5
        %v427 = vor.u32 %v423, %v426
        %v428 = vrot.slane %v427, 4
        %v430 = vshll.u32 %v324, 16
        %v432 = vrot.slane %v430, 5
        %v433 = vsel %vm347, %v428, %v432
        %v434 = vshrl.u32 %v324, 16
        %v436 = vrot.slane %v434, 4
        %v437 = vor.u32 %v436, %v432
        %v438 = vrot.slane %v437, 4
        %v440 = vshll.u32 %v340, 16
        %v442 = vrot.slane %v440, 5
        %v443 = vsel %vm347, %v438, %v442
        %v445 = vshrl.u32 %v325, 16
        %v447 = vrot.slane %v445, 4
        %v448 = vshll.u32 %v325, 16
        %v450 = vrot.slane %v448, 5
        %v451 = vor.u32 %v447, %v450
        %v452 = vrot.slane %v451, 4
        %v454 = vshll.u32 %v326, 16
        %v456 = vrot.slane %v454, 5
        %v457 = vsel %vm347, %v452, %v456
        %v458 = vshrl.u32 %v326, 16
        %v460 = vrot.slane %v458, 4
        %v461 = vor.u32 %v460, %v456
        %v462 = vrot.slane %v461, 4
        %v464 = vshll.u32 %v341, 16
        %v466 = vrot.slane %v464, 5
        %v467 = vsel %vm347, %v462, %v466
        %v469 = vshrl.u32 %v327, 16
        %v471 = vrot.slane %v469, 4
        %v472 = vshll.u32 %v327, 16
        %v474 = vrot.slane %v472, 5
        %v475 = vor.u32 %v471, %v474
        %v476 = vrot.slane %v475, 4
        %v478 = vshll.u32 %v328, 16
        %v480 = vrot.slane %v478, 5
        %v481 = vsel %vm347, %v476, %v480
        %v482 = vshrl.u32 %v328, 16
        %v484 = vrot.slane %v482, 4
        %v485 = vor.u32 %v484, %v480
        %v486 = vrot.slane %v485, 4
        %v488 = vshll.u32 %v342, 16
        %v490 = vrot.slane %v488, 5
        %v491 = vsel %vm347, %v486, %v490
        %v493 = vshrl.u32 %v329, 16
        %v495 = vrot.slane %v493, 4
        %v496 = vshll.u32 %v329, 16
        %v498 = vrot.slane %v496, 5
        %v499 = vor.u32 %v495, %v498
        %v500 = vrot.slane %v499, 4
        %v502 = vshll.u32 %v330, 16
        %v504 = vrot.slane %v502, 5
        %v505 = vsel %vm347, %v500, %v504
        %v506 = vshrl.u32 %v330, 16
        %v508 = vrot.slane %v506, 4
        %v509 = vor.u32 %v508, %v504
        %v510 = vrot.slane %v509, 4
        %v512 = vshll.u32 %v343, 16
        %v514 = vrot.slane %v512, 5
        %v515 = vsel %vm347, %v510, %v514
        %v517 = vshrl.u32 %v331, 16
        %v519 = vrot.slane %v517, 4
        %v520 = vshll.u32 %v331, 16
        %v522 = vrot.slane %v520, 5
        %v523 = vor.u32 %v519, %v522
        %v524 = vrot.slane %v523, 4
        %v526 = vshll.u32 %v332, 16
        %v528 = vrot.slane %v526, 5
        %v529 = vsel %vm347, %v524, %v528
        %v530 = vshrl.u32 %v332, 16
        %v532 = vrot.slane %v530, 4
        %v533 = vor.u32 %v532, %v528
        %v534 = vrot.slane %v533, 4
        %v536 = vshll.u32 %v344, 16
        %v538 = vrot.slane %v536, 5
        %v539 = vsel %vm347, %v534, %v538
        %s540 = scalar_lea.vmem [#allocation5], 16
        %v541 = vld [vmem:[%s540] sm:$0xf]
        %v542 = vld [vmem:[%s540 + $0x4] sm:$0xf]
        %v543 = vld [vmem:[%s540 + $0x8] sm:$0xf]
        %v544 = vld [vmem:[%s540 + $0xc] sm:$0xf]
        %v545 = vunpack.c.l.b16 %v361
        %v546 = vunpack.c.l.b16 %v371
        %v547 = vunpack.c.l.b16 %v385
        %v548 = vunpack.c.l.b16 %v395
        %v549 = vunpack.c.l.b16 %v409
        %v550 = vunpack.c.l.b16 %v419
        %v551 = vunpack.c.l.b16 %v433
        %v552 = vunpack.c.l.b16 %v443
        %v553 = vunpack.c.l.b16 %v457
        %v554 = vunpack.c.l.b16 %v467
        %v555 = vunpack.c.l.b16 %v481
        %v556 = vunpack.c.l.b16 %v491
        %v557 = vunpack.c.l.b16 %v505
        %v558 = vunpack.c.l.b16 %v515
        %v559 = vunpack.c.l.b16 %v529
        %v560 = vunpack.c.l.b16 %v539
        %v561 = vpack.c.b16 %v546, %v545
        %v562 = vpack.c.b16 %v548, %v547
        %v563 = vpack.c.b16 %v550, %v549
        %v564 = vpack.c.b16 %v552, %v551
        %v565 = vpack.c.b16 %v554, %v553
        %v566 = vpack.c.b16 %v556, %v555
        %v567 = vpack.c.b16 %v558, %v557
        %v568 = vpack.c.b16 %v560, %v559
        %v573 = vunpack.c.l.b16 %v541
        %v574 = vunpack.c.l.b16 %v542
        %v575 = vunpack.c.l.b16 %v543
        %v576 = vunpack.c.l.b16 %v544
        %v577 = vpack.c.b16 %v574, %v573
        %v578 = vpack.c.b16 %v576, %v575
        %vm581 = vcmask 261120
        %v583 = vsel %vm581, %v561, 0
        %v586 = vsel %vm581, %v562, 0
        %v589 = vsel %vm581, %v563, 0
        %v592 = vsel %vm581, %v564, 0
        %v595 = vsel %vm581, %v565, 0
        %v598 = vsel %vm581, %v566, 0
        %v601 = vsel %vm581, %v567, 0
        %v604 = vsel %vm581, %v568, 0
        %606 = vmatprep.subr.bf16.mxu0 0
        %607 = vmatpush1.bf16.msra.mxu0 %v577
        %608 = vmatprep.subr.bf16.mxu0 0
        %609 = vmatpush1.bf16.msra.mxu0 %v578
        %610 = vmatprep.subr.bf16.mxu0 0
        %611 = vmatpush1.bf16.msra.mxu0 0
        %612 = vmatprep.subr.bf16.mxu0 0
        %613 = vmatpush1.bf16.msra.mxu0 0
        %614 = vmatprep.subr.bf16.mxu0 0
        %615 = vmatpush1.bf16.msra.mxu0 0
        %616 = vmatprep.subr.bf16.mxu0 0
        %617 = vmatpush1.bf16.msra.mxu0 0
        %618 = vmatprep.subr.bf16.mxu0 0
        %619 = vmatpush1.bf16.msra.mxu0 0
        %620 = vmatprep.subr.bf16.mxu0 0
        %621 = vmatpush1.bf16.msra.mxu0 0
        %622 = vmatprep.subr.bf16.mxu0 0
        %623 = vmatpush1.bf16.msra.mxu0 0
        %624 = vmatprep.subr.bf16.mxu0 0
        %625 = vmatpush1.bf16.msra.mxu0 0
        %626 = vmatprep.subr.bf16.mxu0 0
        %627 = vmatpush1.bf16.msra.mxu0 0
        %628 = vmatprep.subr.bf16.mxu0 0
        %629 = vmatpush1.bf16.msra.mxu0 0
        %630 = vmatprep.subr.bf16.mxu0 0
        %631 = vmatpush1.bf16.msra.mxu0 0
        %632 = vmatprep.subr.bf16.mxu0 0
        %633 = vmatpush1.bf16.msra.mxu0 0
        %634 = vmatprep.subr.bf16.mxu0 0
        %635 = vmatpush1.bf16.msra.mxu0 0
        %636 = vmatprep.subr.bf16.mxu0 0
        %637 = vmatpush1.bf16.msra.mxu0 0
        %638 = vmatprep.mubr.bf16.mxu0 0
        %639 = vmatmul.mubr.bf16.gmra.mrb[0].mxu0 %v583
        %v640 = vpop.f32.mrb[0].mxu0
        %v641 = vadd.f32 0.0, %v640
        %v642 = vpop.f32.mrb[0].mxu0
        %v643 = vpop.f32.mrb[0].mxu0
        %v644 = vadd.f32 0.0, %v643
        %v645 = vpop.f32.mrb[0].mxu0
        %646 = vmatprep.mubr.bf16.mxu0 0
        %647 = vmatmul.mubr.bf16.gmra.mrb[0].mxu0 %v586
        %v648 = vpop.f32.mrb[0].mxu0
        %v649 = vadd.f32 0.0, %v648
        %v650 = vpop.f32.mrb[0].mxu0
        %v651 = vpop.f32.mrb[0].mxu0
        %v652 = vadd.f32 0.0, %v651
        %v653 = vpop.f32.mrb[0].mxu0
        %654 = vmatprep.mubr.bf16.mxu0 0
        %655 = vmatmul.mubr.bf16.gmra.mrb[0].mxu0 %v589
        %v656 = vpop.f32.mrb[0].mxu0
        %v657 = vadd.f32 0.0, %v656
        %v658 = vpop.f32.mrb[0].mxu0
        %v659 = vpop.f32.mrb[0].mxu0
        %v660 = vadd.f32 0.0, %v659
        %v661 = vpop.f32.mrb[0].mxu0
        %662 = vmatprep.mubr.bf16.mxu0 0
        %663 = vmatmul.mubr.bf16.gmra.mrb[0].mxu0 %v592
        %v664 = vpop.f32.mrb[0].mxu0
        %v665 = vadd.f32 0.0, %v664
        %v666 = vpop.f32.mrb[0].mxu0
        %v667 = vpop.f32.mrb[0].mxu0
        %v668 = vadd.f32 0.0, %v667
        %v669 = vpop.f32.mrb[0].mxu0
        %670 = vmatprep.mubr.bf16.mxu0 0
        %671 = vmatmul.mubr.bf16.gmra.mrb[0].mxu0 %v595
        %v672 = vpop.f32.mrb[0].mxu0
        %v673 = vadd.f32 0.0, %v672
        %v674 = vpop.f32.mrb[0].mxu0
        %v675 = vpop.f32.mrb[0].mxu0
        %v676 = vadd.f32 0.0, %v675
        %v677 = vpop.f32.mrb[0].mxu0
        %678 = vmatprep.mubr.bf16.mxu0 0
        %679 = vmatmul.mubr.bf16.gmra.mrb[0].mxu0 %v598
        %v680 = vpop.f32.mrb[0].mxu0
        %v681 = vadd.f32 0.0, %v680
        %v682 = vpop.f32.mrb[0].mxu0
        %v683 = vpop.f32.mrb[0].mxu0
        %v684 = vadd.f32 0.0, %v683
        %v685 = vpop.f32.mrb[0].mxu0
        %686 = vmatprep.mubr.bf16.mxu0 0
        %687 = vmatmul.mubr.bf16.gmra.mrb[0].mxu0 %v601
        %v688 = vpop.f32.mrb[0].mxu0
        %v689 = vadd.f32 0.0, %v688
        %v690 = vpop.f32.mrb[0].mxu0
        %v691 = vpop.f32.mrb[0].mxu0
        %v692 = vadd.f32 0.0, %v691
        %v693 = vpop.f32.mrb[0].mxu0
        %694 = vmatprep.mubr.bf16.mxu0 0
        %695 = vmatmul.mubr.bf16.gmra.mrb[0].mxu0 %v604
        %v696 = vpop.f32.mrb[0].mxu0
        %v697 = vadd.f32 0.0, %v696
        %v698 = vpop.f32.mrb[0].mxu0
        %v699 = vpop.f32.mrb[0].mxu0
        %v700 = vadd.f32 0.0, %v699
        %v701 = vpop.f32.mrb[0].mxu0
        %702 = vdwg.mxu0
        %v719 = vunpack.c.l.b16 %v317
        %v720 = vunpack.c.l.b16 %v318
        %v721 = vunpack.c.l.b16 %v319
        %v722 = vunpack.c.l.b16 %v320
        %v723 = vunpack.c.l.b16 %v321
        %v724 = vunpack.c.l.b16 %v322
        %v725 = vunpack.c.l.b16 %v323
        %v726 = vunpack.c.l.b16 %v324
        %v727 = vunpack.c.l.b16 %v325
        %v728 = vunpack.c.l.b16 %v326
        %v729 = vunpack.c.l.b16 %v327
        %v730 = vunpack.c.l.b16 %v328
        %v731 = vunpack.c.l.b16 %v329
        %v732 = vunpack.c.l.b16 %v330
        %v733 = vunpack.c.l.b16 %v331
        %v734 = vunpack.c.l.b16 %v332
        %v735 = vpack.c.b16 %v720, %v719
        %v736 = vpack.c.b16 %v722, %v721
        %v737 = vpack.c.b16 %v724, %v723
        %v738 = vpack.c.b16 %v726, %v725
        %v739 = vpack.c.b16 %v728, %v727
        %v740 = vpack.c.b16 %v730, %v729
        %v741 = vpack.c.b16 %v732, %v731
        %v742 = vpack.c.b16 %v734, %v733
        %v747 = vunpack.c.l.b16 %v333
        %v748 = vunpack.c.l.b16 %v334
        %v749 = vunpack.c.l.b16 %v335
        %v750 = vunpack.c.l.b16 %v336
        %v751 = vpack.c.b16 %v748, %v747
        %v752 = vpack.c.b16 %v750, %v749
        %v756 = vsel %vm581, %v735, 0
        %v759 = vsel %vm581, %v736, 0
        %v762 = vsel %vm581, %v737, 0
        %v765 = vsel %vm581, %v738, 0
        %v768 = vsel %vm581, %v739, 0
        %v771 = vsel %vm581, %v740, 0
        %v774 = vsel %vm581, %v741, 0
        %v777 = vsel %vm581, %v742, 0
        %779 = vmatprep.subr.bf16.mxu0 0
        %780 = vmatpush1.bf16.msra.mxu0 %v751
        %781 = vmatprep.subr.bf16.mxu0 0
        %782 = vmatpush1.bf16.msra.mxu0 %v752
        %783 = vmatprep.subr.bf16.mxu0 0
        %784 = vmatpush1.bf16.msra.mxu0 0
        %785 = vmatprep.subr.bf16.mxu0 0
        %786 = vmatpush1.bf16.msra.mxu0 0
        %787 = vmatprep.subr.bf16.mxu0 0
        %788 = vmatpush1.bf16.msra.mxu0 0
        %789 = vmatprep.subr.bf16.mxu0 0
        %790 = vmatpush1.bf16.msra.mxu0 0
        %791 = vmatprep.subr.bf16.mxu0 0
        %792 = vmatpush1.bf16.msra.mxu0 0
        %793 = vmatprep.subr.bf16.mxu0 0
        %794 = vmatpush1.bf16.msra.mxu0 0
        %795 = vmatprep.subr.bf16.mxu0 0
        %796 = vmatpush1.bf16.msra.mxu0 0
        %797 = vmatprep.subr.bf16.mxu0 0
        %798 = vmatpush1.bf16.msra.mxu0 0
        %799 = vmatprep.subr.bf16.mxu0 0
        %800 = vmatpush1.bf16.msra.mxu0 0
        %801 = vmatprep.subr.bf16.mxu0 0
        %802 = vmatpush1.bf16.msra.mxu0 0
        %803 = vmatprep.subr.bf16.mxu0 0
        %804 = vmatpush1.bf16.msra.mxu0 0
        %805 = vmatprep.subr.bf16.mxu0 0
        %806 = vmatpush1.bf16.msra.mxu0 0
        %807 = vmatprep.subr.bf16.mxu0 0
        %808 = vmatpush1.bf16.msra.mxu0 0
        %809 = vmatprep.subr.bf16.mxu0 0
        %810 = vmatpush1.bf16.msra.mxu0 0
        %811 = vmatprep.mubr.bf16.mxu0 0
        %812 = vmatmul.mubr.bf16.gmra.mrb[0].mxu0 %v756
        %v813 = vpop.f32.mrb[0].mxu0
        %v814 = vadd.f32 %v641, %v813
        %v815 = vpop.f32.mrb[0].mxu0
        %v816 = vpop.f32.mrb[0].mxu0
        %v817 = vadd.f32 %v644, %v816
        %v818 = vpop.f32.mrb[0].mxu0
        %819 = vmatprep.mubr.bf16.mxu0 0
        %820 = vmatmul.mubr.bf16.gmra.mrb[0].mxu0 %v759
        %v821 = vpop.f32.mrb[0].mxu0
        %v822 = vadd.f32 %v649, %v821
        %v823 = vpop.f32.mrb[0].mxu0
        %v824 = vpop.f32.mrb[0].mxu0
        %v825 = vadd.f32 %v652, %v824
        %v826 = vpop.f32.mrb[0].mxu0
        %827 = vmatprep.mubr.bf16.mxu0 0
        %828 = vmatmul.mubr.bf16.gmra.mrb[0].mxu0 %v762
        %v829 = vpop.f32.mrb[0].mxu0
        %v830 = vadd.f32 %v657, %v829
        %v831 = vpop.f32.mrb[0].mxu0
        %v832 = vpop.f32.mrb[0].mxu0
        %v833 = vadd.f32 %v660, %v832
        %v834 = vpop.f32.mrb[0].mxu0
        %835 = vmatprep.mubr.bf16.mxu0 0
        %836 = vmatmul.mubr.bf16.gmra.mrb[0].mxu0 %v765
        %v837 = vpop.f32.mrb[0].mxu0
        %v838 = vadd.f32 %v665, %v837
        %v839 = vpop.f32.mrb[0].mxu0
        %v840 = vpop.f32.mrb[0].mxu0
        %v841 = vadd.f32 %v668, %v840
        %v842 = vpop.f32.mrb[0].mxu0
        %843 = vmatprep.mubr.bf16.mxu0 0
        %844 = vmatmul.mubr.bf16.gmra.mrb[0].mxu0 %v768
        %v845 = vpop.f32.mrb[0].mxu0
        %v846 = vadd.f32 %v673, %v845
        %v847 = vpop.f32.mrb[0].mxu0
        %v848 = vpop.f32.mrb[0].mxu0
        %v849 = vadd.f32 %v676, %v848
        %v850 = vpop.f32.mrb[0].mxu0
        %851 = vmatprep.mubr.bf16.mxu0 0
        %852 = vmatmul.mubr.bf16.gmra.mrb[0].mxu0 %v771
        %v853 = vpop.f32.mrb[0].mxu0
        %v854 = vadd.f32 %v681, %v853
        %v855 = vpop.f32.mrb[0].mxu0
        %v856 = vpop.f32.mrb[0].mxu0
        %v857 = vadd.f32 %v684, %v856
        %v858 = vpop.f32.mrb[0].mxu0
        %859 = vmatprep.mubr.bf16.mxu0 0
        %860 = vmatmul.mubr.bf16.gmra.mrb[0].mxu0 %v774
        %v861 = vpop.f32.mrb[0].mxu0
        %v862 = vadd.f32 %v689, %v861
        %v863 = vpop.f32.mrb[0].mxu0
        %v864 = vpop.f32.mrb[0].mxu0
        %v865 = vadd.f32 %v692, %v864
        %v866 = vpop.f32.mrb[0].mxu0
        %867 = vmatprep.mubr.bf16.mxu0 0
        %868 = vmatmul.mubr.bf16.gmra.mrb[0].mxu0 %v777
        %v869 = vpop.f32.mrb[0].mxu0
        %v870 = vadd.f32 %v697, %v869
        %v871 = vpop.f32.mrb[0].mxu0
        %v872 = vpop.f32.mrb[0].mxu0
        %v873 = vadd.f32 %v700, %v872
        %v874 = vpop.f32.mrb[0].mxu0
        %875 = vdwg.mxu0
        %v876 = vld [vmem:[%s274] sm:$0xe]
        %v877 = vld [vmem:[%s274 + $0xc] sm:$0xe]
        %v878 = vld [vmem:[%s274 + $0x18] sm:$0xe]
        %v879 = vld [vmem:[%s274 + $0x24] sm:$0xe]
        %v880 = vld [vmem:[%s274 + $0x30] sm:$0xe]
        %v881 = vld [vmem:[%s274 + $0x3c] sm:$0xe]
        %v882 = vld [vmem:[%s274 + $0x48] sm:$0xe]
        %v883 = vld [vmem:[%s274 + $0x54] sm:$0xe]
        %vm900 = vcmask 1042432
        %vm901 = vcmask 1046532
        %vm902 = vmor %vm900, %vm901
        %v903 = vrot.slane %v876, 5
        %v904 = vrot.slane %v903, 4
        %v905 = vrot.slane %v318, 5
        %v906 = vsel %vm902, %v904, %v905
        %v907 = vrot.slane %v905, 4
        %v908 = vrot.slane %v337, 5
        %v909 = vsel %vm902, %v907, %v908
        %v910 = vrot.slane %v877, 5
        %v911 = vrot.slane %v910, 4
        %v912 = vrot.slane %v320, 5
        %v913 = vsel %vm902, %v911, %v912
        %v914 = vrot.slane %v912, 4
        %v915 = vrot.slane %v338, 5
        %v916 = vsel %vm902, %v914, %v915
        %v917 = vrot.slane %v878, 5
        %v918 = vrot.slane %v917, 4
        %v919 = vrot.slane %v322, 5
        %v920 = vsel %vm902, %v918, %v919
        %v921 = vrot.slane %v919, 4
        %v922 = vrot.slane %v339, 5
        %v923 = vsel %vm902, %v921, %v922
        %v924 = vrot.slane %v879, 5
        %v925 = vrot.slane %v924, 4
        %v926 = vrot.slane %v324, 5
        %v927 = vsel %vm902, %v925, %v926
        %v928 = vrot.slane %v926, 4
        %v929 = vrot.slane %v340, 5
        %v930 = vsel %vm902, %v928, %v929
        %v931 = vrot.slane %v880, 5
        %v932 = vrot.slane %v931, 4
        %v933 = vrot.slane %v326, 5
        %v934 = vsel %vm902, %v932, %v933
        %v935 = vrot.slane %v933, 4
        %v936 = vrot.slane %v341, 5
        %v937 = vsel %vm902, %v935, %v936
        %v938 = vrot.slane %v881, 5
        %v939 = vrot.slane %v938, 4
        %v940 = vrot.slane %v328, 5
        %v941 = vsel %vm902, %v939, %v940
        %v942 = vrot.slane %v940, 4
        %v943 = vrot.slane %v342, 5
        %v944 = vsel %vm902, %v942, %v943
        %v945 = vrot.slane %v882, 5
        %v946 = vrot.slane %v945, 4
        %v947 = vrot.slane %v330, 5
        %v948 = vsel %vm902, %v946, %v947
        %v949 = vrot.slane %v947, 4
        %v950 = vrot.slane %v343, 5
        %v951 = vsel %vm902, %v949, %v950
        %v952 = vrot.slane %v883, 5
        %v953 = vrot.slane %v952, 4
        %v954 = vrot.slane %v332, 5
        %v955 = vsel %vm902, %v953, %v954
        %v956 = vrot.slane %v954, 4
        %v957 = vrot.slane %v344, 5
        %v958 = vsel %vm902, %v956, %v957
        %s959 = scalar_lea.vmem [#allocation5], 32
        %v960 = vld [vmem:[%s959] sm:$0xf]
        %v961 = vld [vmem:[%s959 + $0x4] sm:$0xf]
        %v962 = vld [vmem:[%s959 + $0x8] sm:$0xf]
        %v963 = vld [vmem:[%s959 + $0xc] sm:$0xf]
        %v964 = vunpack.c.l.b16 %v906
        %v965 = vunpack.c.l.b16 %v909
        %v966 = vunpack.c.l.b16 %v913
        %v967 = vunpack.c.l.b16 %v916
        %v968 = vunpack.c.l.b16 %v920
        %v969 = vunpack.c.l.b16 %v923
        %v970 = vunpack.c.l.b16 %v927
        %v971 = vunpack.c.l.b16 %v930
        %v972 = vunpack.c.l.b16 %v934
        %v973 = vunpack.c.l.b16 %v937
        %v974 = vunpack.c.l.b16 %v941
        %v975 = vunpack.c.l.b16 %v944
        %v976 = vunpack.c.l.b16 %v948
        %v977 = vunpack.c.l.b16 %v951
        %v978 = vunpack.c.l.b16 %v955
        %v979 = vunpack.c.l.b16 %v958
        %v980 = vpack.c.b16 %v965, %v964
        %v981 = vpack.c.b16 %v967, %v966
        %v982 = vpack.c.b16 %v969, %v968
        %v983 = vpack.c.b16 %v971, %v970
        %v984 = vpack.c.b16 %v973, %v972
        %v985 = vpack.c.b16 %v975, %v974
        %v986 = vpack.c.b16 %v977, %v976
        %v987 = vpack.c.b16 %v979, %v978
        %v992 = vunpack.c.l.b16 %v960
        %v993 = vunpack.c.l.b16 %v961
        %v994 = vunpack.c.l.b16 %v962
        %v995 = vunpack.c.l.b16 %v963
        %v996 = vpack.c.b16 %v993, %v992
        %v997 = vpack.c.b16 %v995, %v994
        %v1001 = vsel %vm581, %v980, 0
        %v1004 = vsel %vm581, %v981, 0
        %v1007 = vsel %vm581, %v982, 0
        %v1010 = vsel %vm581, %v983, 0
        %v1013 = vsel %vm581, %v984, 0
        %v1016 = vsel %vm581, %v985, 0
        %v1019 = vsel %vm581, %v986, 0
        %v1022 = vsel %vm581, %v987, 0
        %1024 = vmatprep.subr.bf16.mxu0 0
        %1025 = vmatpush1.bf16.msra.mxu0 %v996
        %1026 = vmatprep.subr.bf16.mxu0 0
        %1027 = vmatpush1.bf16.msra.mxu0 %v997
        %1028 = vmatprep.subr.bf16.mxu0 0
        %1029 = vmatpush1.bf16.msra.mxu0 0
        %1030 = vmatprep.subr.bf16.mxu0 0
        %1031 = vmatpush1.bf16.msra.mxu0 0
        %1032 = vmatprep.subr.bf16.mxu0 0
        %1033 = vmatpush1.bf16.msra.mxu0 0
        %1034 = vmatprep.subr.bf16.mxu0 0
        %1035 = vmatpush1.bf16.msra.mxu0 0
        %1036 = vmatprep.subr.bf16.mxu0 0
        %1037 = vmatpush1.bf16.msra.mxu0 0
        %1038 = vmatprep.subr.bf16.mxu0 0
        %1039 = vmatpush1.bf16.msra.mxu0 0
        %1040 = vmatprep.subr.bf16.mxu0 0
        %1041 = vmatpush1.bf16.msra.mxu0 0
        %1042 = vmatprep.subr.bf16.mxu0 0
        %1043 = vmatpush1.bf16.msra.mxu0 0
        %1044 = vmatprep.subr.bf16.mxu0 0
        %1045 = vmatpush1.bf16.msra.mxu0 0
        %1046 = vmatprep.subr.bf16.mxu0 0
        %1047 = vmatpush1.bf16.msra.mxu0 0
        %1048 = vmatprep.subr.bf16.mxu0 0
        %1049 = vmatpush1.bf16.msra.mxu0 0
        %1050 = vmatprep.subr.bf16.mxu0 0
        %1051 = vmatpush1.bf16.msra.mxu0 0
        %1052 = vmatprep.subr.bf16.mxu0 0
        %1053 = vmatpush1.bf16.msra.mxu0 0
        %1054 = vmatprep.subr.bf16.mxu0 0
        %1055 = vmatpush1.bf16.msra.mxu0 0
        %1056 = vmatprep.mubr.bf16.mxu0 0
        %1057 = vmatmul.mubr.bf16.gmra.mrb[0].mxu0 %v1001
        %v1058 = vpop.f32.mrb[0].mxu0
        %v1059 = vadd.f32 0.0, %v1058
        %v1060 = vpop.f32.mrb[0].mxu0
        %v1061 = vpop.f32.mrb[0].mxu0
        %v1062 = vadd.f32 0.0, %v1061
        %v1063 = vpop.f32.mrb[0].mxu0
        %1064 = vmatprep.mubr.bf16.mxu0 0
        %1065 = vmatmul.mubr.bf16.gmra.mrb[0].mxu0 %v1004
        %v1066 = vpop.f32.mrb[0].mxu0
        %v1067 = vadd.f32 0.0, %v1066
        %v1068 = vpop.f32.mrb[0].mxu0
        %v1069 = vpop.f32.mrb[0].mxu0
        %v1070 = vadd.f32 0.0, %v1069
        %v1071 = vpop.f32.mrb[0].mxu0
        %1072 = vmatprep.mubr.bf16.mxu0 0
        %1073 = vmatmul.mubr.bf16.gmra.mrb[0].mxu0 %v1007
        %v1074 = vpop.f32.mrb[0].mxu0
        %v1075 = vadd.f32 0.0, %v1074
        %v1076 = vpop.f32.mrb[0].mxu0
        %v1077 = vpop.f32.mrb[0].mxu0
        %v1078 = vadd.f32 0.0, %v1077
        %v1079 = vpop.f32.mrb[0].mxu0
        %1080 = vmatprep.mubr.bf16.mxu0 0
        %1081 = vmatmul.mubr.bf16.gmra.mrb[0].mxu0 %v1010
        %v1082 = vpop.f32.mrb[0].mxu0
        %v1083 = vadd.f32 0.0, %v1082
        %v1084 = vpop.f32.mrb[0].mxu0
        %v1085 = vpop.f32.mrb[0].mxu0
        %v1086 = vadd.f32 0.0, %v1085
        %v1087 = vpop.f32.mrb[0].mxu0
        %1088 = vmatprep.mubr.bf16.mxu0 0
        %1089 = vmatmul.mubr.bf16.gmra.mrb[0].mxu0 %v1013
        %v1090 = vpop.f32.mrb[0].mxu0
        %v1091 = vadd.f32 0.0, %v1090
        %v1092 = vpop.f32.mrb[0].mxu0
        %v1093 = vpop.f32.mrb[0].mxu0
        %v1094 = vadd.f32 0.0, %v1093
        %v1095 = vpop.f32.mrb[0].mxu0
        %1096 = vmatprep.mubr.bf16.mxu0 0
        %1097 = vmatmul.mubr.bf16.gmra.mrb[0].mxu0 %v1016
        %v1098 = vpop.f32.mrb[0].mxu0
        %v1099 = vadd.f32 0.0, %v1098
        %v1100 = vpop.f32.mrb[0].mxu0
        %v1101 = vpop.f32.mrb[0].mxu0
        %v1102 = vadd.f32 0.0, %v1101
        %v1103 = vpop.f32.mrb[0].mxu0
        %1104 = vmatprep.mubr.bf16.mxu0 0
        %1105 = vmatmul.mubr.bf16.gmra.mrb[0].mxu0 %v1019
        %v1106 = vpop.f32.mrb[0].mxu0
        %v1107 = vadd.f32 0.0, %v1106
        %v1108 = vpop.f32.mrb[0].mxu0
        %v1109 = vpop.f32.mrb[0].mxu0
        %v1110 = vadd.f32 0.0, %v1109
        %v1111 = vpop.f32.mrb[0].mxu0
        %1112 = vmatprep.mubr.bf16.mxu0 0
        %1113 = vmatmul.mubr.bf16.gmra.mrb[0].mxu0 %v1022
        %v1114 = vpop.f32.mrb[0].mxu0
        %v1115 = vadd.f32 0.0, %v1114
        %v1116 = vpop.f32.mrb[0].mxu0
        %v1117 = vpop.f32.mrb[0].mxu0
        %v1118 = vadd.f32 0.0, %v1117
        %v1119 = vpop.f32.mrb[0].mxu0
        %1120 = vdwg.mxu0
        %v1121 = vadd.f32 %v814, %v1059
        %v1122 = vadd.f32 %v817, %v1062
        %v1123 = vadd.f32 %v822, %v1067
        %v1124 = vadd.f32 %v825, %v1070
        %v1125 = vadd.f32 %v830, %v1075
        %v1126 = vadd.f32 %v833, %v1078
        %v1127 = vadd.f32 %v838, %v1083
        %v1128 = vadd.f32 %v841, %v1086
        %v1129 = vadd.f32 %v846, %v1091
        %v1130 = vadd.f32 %v849, %v1094
        %v1131 = vadd.f32 %v854, %v1099
        %v1132 = vadd.f32 %v857, %v1102
        %v1133 = vadd.f32 %v862, %v1107
        %v1134 = vadd.f32 %v865, %v1110
        %v1135 = vadd.f32 %v870, %v1115
        %v1136 = vadd.f32 %v873, %v1118
        %v1137 = vld [vmem:[%s274 + $0x8] sm:$0x3]
        %v1138 = vld [vmem:[%s274 + $0x14] sm:$0x3]
        %v1139 = vld [vmem:[%s274 + $0x20] sm:$0x3]
        %v1140 = vld [vmem:[%s274 + $0x2c] sm:$0x3]
        %v1141 = vld [vmem:[%s274 + $0x38] sm:$0x3]
        %v1142 = vld [vmem:[%s274 + $0x44] sm:$0x3]
        %v1143 = vld [vmem:[%s274 + $0x50] sm:$0x3]
        %v1144 = vld [vmem:[%s274 + $0x5c] sm:$0x3]
        %vm1145 = vsmask.f32 2304
        %vm1146 = vsmask.f32 6416
        %vm1147 = vmor %vm1145, %vm1146
        %v1149 = vshrl.u32 %v876, 16
        %v1151 = vrot.slane %v1149, 5
        %v1152 = vshll.u32 %v876, 16
        %v1154 = vrot.slane %v1152, 6
        %v1155 = vor.u32 %v1151, %v1154
        %v1156 = vrot.slane %v1155, 4
        %v1157 = vrot.slane %v362, 5
        %v1158 = vrot.slane %v358, 6
        %v1159 = vor.u32 %v1157, %v1158
        %v1160 = vsel %vm1147, %v1156, %v1159
        %v1161 = vrot.slane %v1159, 4
        %v1163 = vshrl.u32 %v1137, 16
        %v1165 = vrot.slane %v1163, 5
        %v1166 = vshll.u32 %v1137, 16
        %v1168 = vrot.slane %v1166, 6
        %v1169 = vor.u32 %v1165, %v1168
        %v1170 = vsel %vm1147, %v1161, %v1169
        %v1172 = vshrl.u32 %v877, 16
        %v1174 = vrot.slane %v1172, 5
        %v1175 = vshll.u32 %v877, 16
        %v1177 = vrot.slane %v1175, 6
        %v1178 = vor.u32 %v1174, %v1177
        %v1179 = vrot.slane %v1178, 4
        %v1180 = vrot.slane %v386, 5
        %v1181 = vrot.slane %v382, 6
        %v1182 = vor.u32 %v1180, %v1181
        %v1183 = vsel %vm1147, %v1179, %v1182
        %v1184 = vrot.slane %v1182, 4
        %v1186 = vshrl.u32 %v1138, 16
        %v1188 = vrot.slane %v1186, 5
        %v1189 = vshll.u32 %v1138, 16
        %v1191 = vrot.slane %v1189, 6
        %v1192 = vor.u32 %v1188, %v1191
        %v1193 = vsel %vm1147, %v1184, %v1192
        %v1195 = vshrl.u32 %v878, 16
        %v1197 = vrot.slane %v1195, 5
        %v1198 = vshll.u32 %v878, 16
        %v1200 = vrot.slane %v1198, 6
        %v1201 = vor.u32 %v1197, %v1200
        %v1202 = vrot.slane %v1201, 4
        %v1203 = vrot.slane %v410, 5
        %v1204 = vrot.slane %v406, 6
        %v1205 = vor.u32 %v1203, %v1204
        %v1206 = vsel %vm1147, %v1202, %v1205
        %v1207 = vrot.slane %v1205, 4
        %v1209 = vshrl.u32 %v1139, 16
        %v1211 = vrot.slane %v1209, 5
        %v1212 = vshll.u32 %v1139, 16
        %v1214 = vrot.slane %v1212, 6
        %v1215 = vor.u32 %v1211, %v1214
        %v1216 = vsel %vm1147, %v1207, %v1215
        %v1218 = vshrl.u32 %v879, 16
        %v1220 = vrot.slane %v1218, 5
        %v1221 = vshll.u32 %v879, 16
        %v1223 = vrot.slane %v1221, 6
        %v1224 = vor.u32 %v1220, %v1223
        %v1225 = vrot.slane %v1224, 4
        %v1226 = vrot.slane %v434, 5
        %v1227 = vrot.slane %v430, 6
        %v1228 = vor.u32 %v1226, %v1227
        %v1229 = vsel %vm1147, %v1225, %v1228
        %v1230 = vrot.slane %v1228, 4
        %v1232 = vshrl.u32 %v1140, 16
        %v1234 = vrot.slane %v1232, 5
        %v1235 = vshll.u32 %v1140, 16
        %v1237 = vrot.slane %v1235, 6
        %v1238 = vor.u32 %v1234, %v1237
        %v1239 = vsel %vm1147, %v1230, %v1238
        %v1241 = vshrl.u32 %v880, 16
        %v1243 = vrot.slane %v1241, 5
        %v1244 = vshll.u32 %v880, 16
        %v1246 = vrot.slane %v1244, 6
        %v1247 = vor.u32 %v1243, %v1246
        %v1248 = vrot.slane %v1247, 4
        %v1249 = vrot.slane %v458, 5
        %v1250 = vrot.slane %v454, 6
        %v1251 = vor.u32 %v1249, %v1250
        %v1252 = vsel %vm1147, %v1248, %v1251
        %v1253 = vrot.slane %v1251, 4
        %v1255 = vshrl.u32 %v1141, 16
        %v1257 = vrot.slane %v1255, 5
        %v1258 = vshll.u32 %v1141, 16
        %v1260 = vrot.slane %v1258, 6
        %v1261 = vor.u32 %v1257, %v1260
        %v1262 = vsel %vm1147, %v1253, %v1261
        %v1264 = vshrl.u32 %v881, 16
        %v1266 = vrot.slane %v1264, 5
        %v1267 = vshll.u32 %v881, 16
        %v1269 = vrot.slane %v1267, 6
        %v1270 = vor.u32 %v1266, %v1269
        %v1271 = vrot.slane %v1270, 4
        %v1272 = vrot.slane %v482, 5
        %v1273 = vrot.slane %v478, 6
        %v1274 = vor.u32 %v1272, %v1273
        %v1275 = vsel %vm1147, %v1271, %v1274
        %v1276 = vrot.slane %v1274, 4
        %v1278 = vshrl.u32 %v1142, 16
        %v1280 = vrot.slane %v1278, 5
        %v1281 = vshll.u32 %v1142, 16
        %v1283 = vrot.slane %v1281, 6
        %v1284 = vor.u32 %v1280, %v1283
        %v1285 = vsel %vm1147, %v1276, %v1284
        %v1287 = vshrl.u32 %v882, 16
        %v1289 = vrot.slane %v1287, 5
        %v1290 = vshll.u32 %v882, 16
        %v1292 = vrot.slane %v1290, 6
        %v1293 = vor.u32 %v1289, %v1292
        %v1294 = vrot.slane %v1293, 4
        %v1295 = vrot.slane %v506, 5
        %v1296 = vrot.slane %v502, 6
        %v1297 = vor.u32 %v1295, %v1296
        %v1298 = vsel %vm1147, %v1294, %v1297
        %v1299 = vrot.slane %v1297, 4
        %v1301 = vshrl.u32 %v1143, 16
        %v1303 = vrot.slane %v1301, 5
        %v1304 = vshll.u32 %v1143, 16
        %v1306 = vrot.slane %v1304, 6
        %v1307 = vor.u32 %v1303, %v1306
        %v1308 = vsel %vm1147, %v1299, %v1307
        %v1310 = vshrl.u32 %v883, 16
        %v1312 = vrot.slane %v1310, 5
        %v1313 = vshll.u32 %v883, 16
        %v1315 = vrot.slane %v1313, 6
        %v1316 = vor.u32 %v1312, %v1315
        %v1317 = vrot.slane %v1316, 4
        %v1318 = vrot.slane %v530, 5
        %v1319 = vrot.slane %v526, 6
        %v1320 = vor.u32 %v1318, %v1319
        %v1321 = vsel %vm1147, %v1317, %v1320
        %v1322 = vrot.slane %v1320, 4
        %v1324 = vshrl.u32 %v1144, 16
        %v1326 = vrot.slane %v1324, 5
        %v1327 = vshll.u32 %v1144, 16
        %v1329 = vrot.slane %v1327, 6
        %v1330 = vor.u32 %v1326, %v1329
        %v1331 = vsel %vm1147, %v1322, %v1330
        %s1332 = scalar_lea.vmem [#allocation5], 48
        %v1333 = vld [vmem:[%s1332] sm:$0xf]
        %v1334 = vld [vmem:[%s1332 + $0x4] sm:$0xf]
        %v1335 = vld [vmem:[%s1332 + $0x8] sm:$0xf]
        %v1336 = vld [vmem:[%s1332 + $0xc] sm:$0xf]
        %v1337 = vunpack.c.l.b16 %v1160
        %v1338 = vunpack.c.l.b16 %v1170
        %v1339 = vunpack.c.l.b16 %v1183
        %v1340 = vunpack.c.l.b16 %v1193
        %v1341 = vunpack.c.l.b16 %v1206
        %v1342 = vunpack.c.l.b16 %v1216
        %v1343 = vunpack.c.l.b16 %v1229
        %v1344 = vunpack.c.l.b16 %v1239
        %v1345 = vunpack.c.l.b16 %v1252
        %v1346 = vunpack.c.l.b16 %v1262
        %v1347 = vunpack.c.l.b16 %v1275
        %v1348 = vunpack.c.l.b16 %v1285
        %v1349 = vunpack.c.l.b16 %v1298
        %v1350 = vunpack.c.l.b16 %v1308
        %v1351 = vunpack.c.l.b16 %v1321
        %v1352 = vunpack.c.l.b16 %v1331
        %v1353 = vpack.c.b16 %v1338, %v1337
        %v1354 = vpack.c.b16 %v1340, %v1339
        %v1355 = vpack.c.b16 %v1342, %v1341
        %v1356 = vpack.c.b16 %v1344, %v1343
        %v1357 = vpack.c.b16 %v1346, %v1345
        %v1358 = vpack.c.b16 %v1348, %v1347
        %v1359 = vpack.c.b16 %v1350, %v1349
        %v1360 = vpack.c.b16 %v1352, %v1351
        %v1365 = vunpack.c.l.b16 %v1333
        %v1366 = vunpack.c.l.b16 %v1334
        %v1367 = vunpack.c.l.b16 %v1335
        %v1368 = vunpack.c.l.b16 %v1336
        %v1369 = vpack.c.b16 %v1366, %v1365
        %v1370 = vpack.c.b16 %v1368, %v1367
        %v1374 = vsel %vm581, %v1353, 0
        %v1377 = vsel %vm581, %v1354, 0
        %v1380 = vsel %vm581, %v1355, 0
        %v1383 = vsel %vm581, %v1356, 0
        %v1386 = vsel %vm581, %v1357, 0
        %v1389 = vsel %vm581, %v1358, 0
        %v1392 = vsel %vm581, %v1359, 0
        %v1395 = vsel %vm581, %v1360, 0
        %1397 = vmatprep.subr.bf16.mxu0 0
        %1398 = vmatpush1.bf16.msra.mxu0 %v1369
        %1399 = vmatprep.subr.bf16.mxu0 0
        %1400 = vmatpush1.bf16.msra.mxu0 %v1370
        %1401 = vmatprep.subr.bf16.mxu0 0
        %1402 = vmatpush1.bf16.msra.mxu0 0
        %1403 = vmatprep.subr.bf16.mxu0 0
        %1404 = vmatpush1.bf16.msra.mxu0 0
        %1405 = vmatprep.subr.bf16.mxu0 0
        %1406 = vmatpush1.bf16.msra.mxu0 0
        %1407 = vmatprep.subr.bf16.mxu0 0
        %1408 = vmatpush1.bf16.msra.mxu0 0
        %1409 = vmatprep.subr.bf16.mxu0 0
        %1410 = vmatpush1.bf16.msra.mxu0 0
        %1411 = vmatprep.subr.bf16.mxu0 0
        %1412 = vmatpush1.bf16.msra.mxu0 0
        %1413 = vmatprep.subr.bf16.mxu0 0
        %1414 = vmatpush1.bf16.msra.mxu0 0
        %1415 = vmatprep.subr.bf16.mxu0 0
        %1416 = vmatpush1.bf16.msra.mxu0 0
        %1417 = vmatprep.subr.bf16.mxu0 0
        %1418 = vmatpush1.bf16.msra.mxu0 0
        %1419 = vmatprep.subr.bf16.mxu0 0
        %1420 = vmatpush1.bf16.msra.mxu0 0
        %1421 = vmatprep.subr.bf16.mxu0 0
        %1422 = vmatpush1.bf16.msra.mxu0 0
        %1423 = vmatprep.subr.bf16.mxu0 0
        %1424 = vmatpush1.bf16.msra.mxu0 0
        %1425 = vmatprep.subr.bf16.mxu0 0
        %1426 = vmatpush1.bf16.msra.mxu0 0
        %1427 = vmatprep.subr.bf16.mxu0 0
        %1428 = vmatpush1.bf16.msra.mxu0 0
        %1429 = vmatprep.mubr.bf16.mxu0 0
        %1430 = vmatmul.mubr.bf16.gmra.mrb[0].mxu0 %v1374
        %v1431 = vpop.f32.mrb[0].mxu0
        %v1432 = vadd.f32 0.0, %v1431
        %v1433 = vpop.f32.mrb[0].mxu0
        %v1434 = vpop.f32.mrb[0].mxu0
        %v1435 = vadd.f32 0.0, %v1434
        %v1436 = vpop.f32.mrb[0].mxu0
        %1437 = vmatprep.mubr.bf16.mxu0 0
        %1438 = vmatmul.mubr.bf16.gmra.mrb[0].mxu0 %v1377
        %v1439 = vpop.f32.mrb[0].mxu0
        %v1440 = vadd.f32 0.0, %v1439
        %v1441 = vpop.f32.mrb[0].mxu0
        %v1442 = vpop.f32.mrb[0].mxu0
        %v1443 = vadd.f32 0.0, %v1442
        %v1444 = vpop.f32.mrb[0].mxu0
        %1445 = vmatprep.mubr.bf16.mxu0 0
        %1446 = vmatmul.mubr.bf16.gmra.mrb[0].mxu0 %v1380
        %v1447 = vpop.f32.mrb[0].mxu0
        %v1448 = vadd.f32 0.0, %v1447
        %v1449 = vpop.f32.mrb[0].mxu0
        %v1450 = vpop.f32.mrb[0].mxu0
        %v1451 = vadd.f32 0.0, %v1450
        %v1452 = vpop.f32.mrb[0].mxu0
        %1453 = vmatprep.mubr.bf16.mxu0 0
        %1454 = vmatmul.mubr.bf16.gmra.mrb[0].mxu0 %v1383
        %v1455 = vpop.f32.mrb[0].mxu0
        %v1456 = vadd.f32 0.0, %v1455
        %v1457 = vpop.f32.mrb[0].mxu0
        %v1458 = vpop.f32.mrb[0].mxu0
        %v1459 = vadd.f32 0.0, %v1458
        %v1460 = vpop.f32.mrb[0].mxu0
        %1461 = vmatprep.mubr.bf16.mxu0 0
        %1462 = vmatmul.mubr.bf16.gmra.mrb[0].mxu0 %v1386
        %v1463 = vpop.f32.mrb[0].mxu0
        %v1464 = vadd.f32 0.0, %v1463
        %v1465 = vpop.f32.mrb[0].mxu0
        %v1466 = vpop.f32.mrb[0].mxu0
        %v1467 = vadd.f32 0.0, %v1466
        %v1468 = vpop.f32.mrb[0].mxu0
        %1469 = vmatprep.mubr.bf16.mxu0 0
        %1470 = vmatmul.mubr.bf16.gmra.mrb[0].mxu0 %v1389
        %v1471 = vpop.f32.mrb[0].mxu0
        %v1472 = vadd.f32 0.0, %v1471
        %v1473 = vpop.f32.mrb[0].mxu0
        %v1474 = vpop.f32.mrb[0].mxu0
        %v1475 = vadd.f32 0.0, %v1474
        %v1476 = vpop.f32.mrb[0].mxu0
        %1477 = vmatprep.mubr.bf16.mxu0 0
        %1478 = vmatmul.mubr.bf16.gmra.mrb[0].mxu0 %v1392
        %v1479 = vpop.f32.mrb[0].mxu0
        %v1480 = vadd.f32 0.0, %v1479
        %v1481 = vpop.f32.mrb[0].mxu0
        %v1482 = vpop.f32.mrb[0].mxu0
        %v1483 = vadd.f32 0.0, %v1482
        %v1484 = vpop.f32.mrb[0].mxu0
        %1485 = vmatprep.mubr.bf16.mxu0 0
        %1486 = vmatmul.mubr.bf16.gmra.mrb[0].mxu0 %v1395
        %v1487 = vpop.f32.mrb[0].mxu0
        %v1488 = vadd.f32 0.0, %v1487
        %v1489 = vpop.f32.mrb[0].mxu0
        %v1490 = vpop.f32.mrb[0].mxu0
        %v1491 = vadd.f32 0.0, %v1490
        %v1492 = vpop.f32.mrb[0].mxu0
        %1493 = vdwg.mxu0
        %v1494 = vadd.f32 %v1121, %v1432
        %v1495 = vadd.f32 %v1122, %v1435
        %v1496 = vadd.f32 %v1123, %v1440
        %v1497 = vadd.f32 %v1124, %v1443
        %v1498 = vadd.f32 %v1125, %v1448
        %v1499 = vadd.f32 %v1126, %v1451
        %v1500 = vadd.f32 %v1127, %v1456
        %v1501 = vadd.f32 %v1128, %v1459
        %v1502 = vadd.f32 %v1129, %v1464
        %v1503 = vadd.f32 %v1130, %v1467
        %v1504 = vadd.f32 %v1131, %v1472
        %v1505 = vadd.f32 %v1132, %v1475
        %v1506 = vadd.f32 %v1133, %v1480
        %v1507 = vadd.f32 %v1134, %v1483
        %v1508 = vadd.f32 %v1135, %v1488
        %v1509 = vadd.f32 %v1136, %v1491
        %v1510 = vld [vmem:[%s274] sm:$0xc]
        %v1511 = vld [vmem:[%s274 + $0xc] sm:$0xc]
        %v1512 = vld [vmem:[%s274 + $0x18] sm:$0xc]
        %v1513 = vld [vmem:[%s274 + $0x24] sm:$0xc]
        %v1514 = vld [vmem:[%s274 + $0x30] sm:$0xc]
        %v1515 = vld [vmem:[%s274 + $0x3c] sm:$0xc]
        %v1516 = vld [vmem:[%s274 + $0x48] sm:$0xc]
        %v1517 = vld [vmem:[%s274 + $0x54] sm:$0xc]
        %vm1534 = vcmask 1041408
        %vm1535 = vcmask 1045508
        %vm1536 = vmor %vm1534, %vm1535
        %v1537 = vrot.slane %v1510, 6
        %v1538 = vrot.slane %v1537, 4
        %v1539 = vrot.slane %v318, 6
        %v1540 = vsel %vm1536, %v1538, %v1539
        %v1541 = vrot.slane %v1539, 4
        %v1542 = vrot.slane %v1137, 6
        %v1543 = vsel %vm1536, %v1541, %v1542
        %v1544 = vrot.slane %v1511, 6
        %v1545 = vrot.slane %v1544, 4
        %v1546 = vrot.slane %v320, 6
        %v1547 = vsel %vm1536, %v1545, %v1546
        %v1548 = vrot.slane %v1546, 4
        %v1549 = vrot.slane %v1138, 6
        %v1550 = vsel %vm1536, %v1548, %v1549
        %v1551 = vrot.slane %v1512, 6
        %v1552 = vrot.slane %v1551, 4
        %v1553 = vrot.slane %v322, 6
        %v1554 = vsel %vm1536, %v1552, %v1553
        %v1555 = vrot.slane %v1553, 4
        %v1556 = vrot.slane %v1139, 6
        %v1557 = vsel %vm1536, %v1555, %v1556
        %v1558 = vrot.slane %v1513, 6
        %v1559 = vrot.slane %v1558, 4
        %v1560 = vrot.slane %v324, 6
        %v1561 = vsel %vm1536, %v1559, %v1560
        %v1562 = vrot.slane %v1560, 4
        %v1563 = vrot.slane %v1140, 6
        %v1564 = vsel %vm1536, %v1562, %v1563
        %v1565 = vrot.slane %v1514, 6
        %v1566 = vrot.slane %v1565, 4
        %v1567 = vrot.slane %v326, 6
        %v1568 = vsel %vm1536, %v1566, %v1567
        %v1569 = vrot.slane %v1567, 4
        %v1570 = vrot.slane %v1141, 6
        %v1571 = vsel %vm1536, %v1569, %v1570
        %v1572 = vrot.slane %v1515, 6
        %v1573 = vrot.slane %v1572, 4
        %v1574 = vrot.slane %v328, 6
        %v1575 = vsel %vm1536, %v1573, %v1574
        %v1576 = vrot.slane %v1574, 4
        %v1577 = vrot.slane %v1142, 6
        %v1578 = vsel %vm1536, %v1576, %v1577
        %v1579 = vrot.slane %v1516, 6
        %v1580 = vrot.slane %v1579, 4
        %v1581 = vrot.slane %v330, 6
        %v1582 = vsel %vm1536, %v1580, %v1581
        %v1583 = vrot.slane %v1581, 4
        %v1584 = vrot.slane %v1143, 6
        %v1585 = vsel %vm1536, %v1583, %v1584
        %v1586 = vrot.slane %v1517, 6
        %v1587 = vrot.slane %v1586, 4
        %v1588 = vrot.slane %v332, 6
        %v1589 = vsel %vm1536, %v1587, %v1588
        %v1590 = vrot.slane %v1588, 4
        %v1591 = vrot.slane %v1144, 6
        %v1592 = vsel %vm1536, %v1590, %v1591
        %s1593 = scalar_lea.vmem [#allocation5], 64
        %v1594 = vld [vmem:[%s1593] sm:$0xf]
        %v1595 = vld [vmem:[%s1593 + $0x4] sm:$0xf]
        %v1596 = vld [vmem:[%s1593 + $0x8] sm:$0xf]
        %v1597 = vld [vmem:[%s1593 + $0xc] sm:$0xf]
        %v1598 = vunpack.c.l.b16 %v1540
        %v1599 = vunpack.c.l.b16 %v1543
        %v1600 = vunpack.c.l.b16 %v1547
        %v1601 = vunpack.c.l.b16 %v1550
        %v1602 = vunpack.c.l.b16 %v1554
        %v1603 = vunpack.c.l.b16 %v1557
        %v1604 = vunpack.c.l.b16 %v1561
        %v1605 = vunpack.c.l.b16 %v1564
        %v1606 = vunpack.c.l.b16 %v1568
        %v1607 = vunpack.c.l.b16 %v1571
        %v1608 = vunpack.c.l.b16 %v1575
        %v1609 = vunpack.c.l.b16 %v1578
        %v1610 = vunpack.c.l.b16 %v1582
        %v1611 = vunpack.c.l.b16 %v1585
        %v1612 = vunpack.c.l.b16 %v1589
        %v1613 = vunpack.c.l.b16 %v1592
        %v1614 = vpack.c.b16 %v1599, %v1598
        %v1615 = vpack.c.b16 %v1601, %v1600
        %v1616 = vpack.c.b16 %v1603, %v1602
        %v1617 = vpack.c.b16 %v1605, %v1604
        %v1618 = vpack.c.b16 %v1607, %v1606
        %v1619 = vpack.c.b16 %v1609, %v1608
        %v1620 = vpack.c.b16 %v1611, %v1610
        %v1621 = vpack.c.b16 %v1613, %v1612
        %v1626 = vunpack.c.l.b16 %v1594
        %v1627 = vunpack.c.l.b16 %v1595
        %v1628 = vunpack.c.l.b16 %v1596
        %v1629 = vunpack.c.l.b16 %v1597
        %v1630 = vpack.c.b16 %v1627, %v1626
        %v1631 = vpack.c.b16 %v1629, %v1628
        %v1635 = vsel %vm581, %v1614, 0
        %v1638 = vsel %vm581, %v1615, 0
        %v1641 = vsel %vm581, %v1616, 0
        %v1644 = vsel %vm581, %v1617, 0
        %v1647 = vsel %vm581, %v1618, 0
        %v1650 = vsel %vm581, %v1619, 0
        %v1653 = vsel %vm581, %v1620, 0
        %v1656 = vsel %vm581, %v1621, 0
        %1658 = vmatprep.subr.bf16.mxu0 0
        %1659 = vmatpush1.bf16.msra.mxu0 %v1630
        %1660 = vmatprep.subr.bf16.mxu0 0
        %1661 = vmatpush1.bf16.msra.mxu0 %v1631
        %1662 = vmatprep.subr.bf16.mxu0 0
        %1663 = vmatpush1.bf16.msra.mxu0 0
        %1664 = vmatprep.subr.bf16.mxu0 0
        %1665 = vmatpush1.bf16.msra.mxu0 0
        %1666 = vmatprep.subr.bf16.mxu0 0
        %1667 = vmatpush1.bf16.msra.mxu0 0
        %1668 = vmatprep.subr.bf16.mxu0 0
        %1669 = vmatpush1.bf16.msra.mxu0 0
        %1670 = vmatprep.subr.bf16.mxu0 0
        %1671 = vmatpush1.bf16.msra.mxu0 0
        %1672 = vmatprep.subr.bf16.mxu0 0
        %1673 = vmatpush1.bf16.msra.mxu0 0
        %1674 = vmatprep.subr.bf16.mxu0 0
        %1675 = vmatpush1.bf16.msra.mxu0 0
        %1676 = vmatprep.subr.bf16.mxu0 0
        %1677 = vmatpush1.bf16.msra.mxu0 0
        %1678 = vmatprep.subr.bf16.mxu0 0
        %1679 = vmatpush1.bf16.msra.mxu0 0
        %1680 = vmatprep.subr.bf16.mxu0 0
        %1681 = vmatpush1.bf16.msra.mxu0 0
        %1682 = vmatprep.subr.bf16.mxu0 0
        %1683 = vmatpush1.bf16.msra.mxu0 0
        %1684 = vmatprep.subr.bf16.mxu0 0
        %1685 = vmatpush1.bf16.msra.mxu0 0
        %1686 = vmatprep.subr.bf16.mxu0 0
        %1687 = vmatpush1.bf16.msra.mxu0 0
        %1688 = vmatprep.subr.bf16.mxu0 0
        %1689 = vmatpush1.bf16.msra.mxu0 0
        %1690 = vmatprep.mubr.bf16.mxu0 0
        %1691 = vmatmul.mubr.bf16.gmra.mrb[0].mxu0 %v1635
        %v1692 = vpop.f32.mrb[0].mxu0
        %v1693 = vadd.f32 0.0, %v1692
        %v1694 = vpop.f32.mrb[0].mxu0
        %v1695 = vpop.f32.mrb[0].mxu0
        %v1696 = vadd.f32 0.0, %v1695
        %v1697 = vpop.f32.mrb[0].mxu0
        %1698 = vmatprep.mubr.bf16.mxu0 0
        %1699 = vmatmul.mubr.bf16.gmra.mrb[0].mxu0 %v1638
        %v1700 = vpop.f32.mrb[0].mxu0
        %v1701 = vadd.f32 0.0, %v1700
        %v1702 = vpop.f32.mrb[0].mxu0
        %v1703 = vpop.f32.mrb[0].mxu0
        %v1704 = vadd.f32 0.0, %v1703
        %v1705 = vpop.f32.mrb[0].mxu0
        %1706 = vmatprep.mubr.bf16.mxu0 0
        %1707 = vmatmul.mubr.bf16.gmra.mrb[0].mxu0 %v1641
        %v1708 = vpop.f32.mrb[0].mxu0
        %v1709 = vadd.f32 0.0, %v1708
        %v1710 = vpop.f32.mrb[0].mxu0
        %v1711 = vpop.f32.mrb[0].mxu0
        %v1712 = vadd.f32 0.0, %v1711
        %v1713 = vpop.f32.mrb[0].mxu0
        %1714 = vmatprep.mubr.bf16.mxu0 0
        %1715 = vmatmul.mubr.bf16.gmra.mrb[0].mxu0 %v1644
        %v1716 = vpop.f32.mrb[0].mxu0
        %v1717 = vadd.f32 0.0, %v1716
        %v1718 = vpop.f32.mrb[0].mxu0
        %v1719 = vpop.f32.mrb[0].mxu0
        %v1720 = vadd.f32 0.0, %v1719
        %v1721 = vpop.f32.mrb[0].mxu0
        %1722 = vmatprep.mubr.bf16.mxu0 0
        %1723 = vmatmul.mubr.bf16.gmra.mrb[0].mxu0 %v1647
        %v1724 = vpop.f32.mrb[0].mxu0
        %v1725 = vadd.f32 0.0, %v1724
        %v1726 = vpop.f32.mrb[0].mxu0
        %v1727 = vpop.f32.mrb[0].mxu0
        %v1728 = vadd.f32 0.0, %v1727
        %v1729 = vpop.f32.mrb[0].mxu0
        %1730 = vmatprep.mubr.bf16.mxu0 0
        %1731 = vmatmul.mubr.bf16.gmra.mrb[0].mxu0 %v1650
        %v1732 = vpop.f32.mrb[0].mxu0
        %v1733 = vadd.f32 0.0, %v1732
        %v1734 = vpop.f32.mrb[0].mxu0
        %v1735 = vpop.f32.mrb[0].mxu0
        %v1736 = vadd.f32 0.0, %v1735
        %v1737 = vpop.f32.mrb[0].mxu0
        %1738 = vmatprep.mubr.bf16.mxu0 0
        %1739 = vmatmul.mubr.bf16.gmra.mrb[0].mxu0 %v1653
        %v1740 = vpop.f32.mrb[0].mxu0
        %v1741 = vadd.f32 0.0, %v1740
        %v1742 = vpop.f32.mrb[0].mxu0
        %v1743 = vpop.f32.mrb[0].mxu0
        %v1744 = vadd.f32 0.0, %v1743
        %v1745 = vpop.f32.mrb[0].mxu0
        %1746 = vmatprep.mubr.bf16.mxu0 0
        %1747 = vmatmul.mubr.bf16.gmra.mrb[0].mxu0 %v1656
        %v1748 = vpop.f32.mrb[0].mxu0
        %v1749 = vadd.f32 0.0, %v1748
        %v1750 = vpop.f32.mrb[0].mxu0
        %v1751 = vpop.f32.mrb[0].mxu0
        %v1752 = vadd.f32 0.0, %v1751
        %v1753 = vpop.f32.mrb[0].mxu0
        %1754 = vdwg.mxu0
        %v1755 = vadd.f32 %v1494, %v1693
        %v1756 = vadd.f32 %v1495, %v1696
        %v1757 = vadd.f32 %v1496, %v1701
        %v1758 = vadd.f32 %v1497, %v1704
        %v1759 = vadd.f32 %v1498, %v1709
        %v1760 = vadd.f32 %v1499, %v1712
        %v1761 = vadd.f32 %v1500, %v1717
        %v1762 = vadd.f32 %v1501, %v1720
        %v1763 = vadd.f32 %v1502, %v1725
        %v1764 = vadd.f32 %v1503, %v1728
        %v1765 = vadd.f32 %v1504, %v1733
        %v1766 = vadd.f32 %v1505, %v1736
        %v1767 = vadd.f32 %v1506, %v1741
        %v1768 = vadd.f32 %v1507, %v1744
        %v1769 = vadd.f32 %v1508, %v1749
        %v1770 = vadd.f32 %v1509, %v1752
        %v1771 = vld [vmem:[%s2] sm:$0x1]
        %v1773 = vlaneseq
        %v1774 = vshrl.u32 %v1773, 7
        %v1775 = vsub.s32 0, %v1774
        %v1776 = vrot.slane %v1771, %v1775
        %v1778 = vadd.f32 %v1755, %v1776
        %v1779 = vadd.f32 %v1756, %v1776
        %v1780 = vadd.f32 %v1757, %v1776
        %v1781 = vadd.f32 %v1758, %v1776
        %v1782 = vadd.f32 %v1759, %v1776
        %v1783 = vadd.f32 %v1760, %v1776
        %v1784 = vadd.f32 %v1761, %v1776
        %v1785 = vadd.f32 %v1762, %v1776
        %v1786 = vadd.f32 %v1763, %v1776
        %v1787 = vadd.f32 %v1764, %v1776
        %v1788 = vadd.f32 %v1765, %v1776
        %v1789 = vadd.f32 %v1766, %v1776
        %v1790 = vadd.f32 %v1767, %v1776
        %v1791 = vadd.f32 %v1768, %v1776
        %v1792 = vadd.f32 %v1769, %v1776
        %v1793 = vadd.f32 %v1770, %v1776
        %v1794 = vmax.f32 %v1778, 0.0
        %v1795 = vmax.f32 %v1779, 0.0
        %v1796 = vmax.f32 %v1780, 0.0
        %v1797 = vmax.f32 %v1781, 0.0
        %v1798 = vmax.f32 %v1782, 0.0
        %v1799 = vmax.f32 %v1783, 0.0
        %v1800 = vmax.f32 %v1784, 0.0
        %v1801 = vmax.f32 %v1785, 0.0
        %v1802 = vmax.f32 %v1786, 0.0
        %v1803 = vmax.f32 %v1787, 0.0
        %v1804 = vmax.f32 %v1788, 0.0
        %v1805 = vmax.f32 %v1789, 0.0
        %v1806 = vmax.f32 %v1790, 0.0
        %v1807 = vmax.f32 %v1791, 0.0
        %v1808 = vmax.f32 %v1792, 0.0
        %v1809 = vmax.f32 %v1793, 0.0
        %v1810 = vld [vmem:[#allocation7] sm:$0xff]
        %v1811 = vld [vmem:[#allocation7 + $0x8] sm:$0xff]
        %v1812 = vmul.f32 %v1794, %v1810
        %v1813 = vmul.f32 %v1795, %v1811
        %v1814 = vmul.f32 %v1796, %v1810
        %v1815 = vmul.f32 %v1797, %v1811
        %v1816 = vmul.f32 %v1798, %v1810
        %v1817 = vmul.f32 %v1799, %v1811
        %v1818 = vmul.f32 %v1800, %v1810
        %v1819 = vmul.f32 %v1801, %v1811
        %v1820 = vmul.f32 %v1802, %v1810
        %v1821 = vmul.f32 %v1803, %v1811
        %v1822 = vmul.f32 %v1804, %v1810
        %v1823 = vmul.f32 %v1805, %v1811
        %v1824 = vmul.f32 %v1806, %v1810
        %v1825 = vmul.f32 %v1807, %v1811
        %v1826 = vmul.f32 %v1808, %v1810
        %v1827 = vmul.f32 %v1809, %v1811
        %v1828 = vmax.f32 %v1812, %v1813
        %v1829 = vrot.slane %v1828, 4
        %v1830 = vmax.f32 %v1828, %v1829
        %v1831 = vrot.slane %v1830, 2
        %v1832 = vmax.f32 %v1830, %v1831
        %v1833 = vrot.slane %v1832, 1
        %v1834 = vmax.f32 %v1832, %v1833
        %v1835 = vmax.f32 %v1814, %v1815
        %v1836 = vrot.slane %v1835, 4
        %v1837 = vmax.f32 %v1835, %v1836
        %v1838 = vrot.slane %v1837, 2
        %v1839 = vmax.f32 %v1837, %v1838
        %v1840 = vrot.slane %v1839, 1
        %v1841 = vmax.f32 %v1839, %v1840
        %v1842 = vmax.f32 %v1816, %v1817
        %v1843 = vrot.slane %v1842, 4
        %v1844 = vmax.f32 %v1842, %v1843
        %v1845 = vrot.slane %v1844, 2
        %v1846 = vmax.f32 %v1844, %v1845
        %v1847 = vrot.slane %v1846, 1
        %v1848 = vmax.f32 %v1846, %v1847
        %v1849 = vmax.f32 %v1818, %v1819
        %v1850 = vrot.slane %v1849, 4
        %v1851 = vmax.f32 %v1849, %v1850
        %v1852 = vrot.slane %v1851, 2
        %v1853 = vmax.f32 %v1851, %v1852
        %v1854 = vrot.slane %v1853, 1
        %v1855 = vmax.f32 %v1853, %v1854
        %v1856 = vmax.f32 %v1820, %v1821
        %v1857 = vrot.slane %v1856, 4
        %v1858 = vmax.f32 %v1856, %v1857
        %v1859 = vrot.slane %v1858, 2
        %v1860 = vmax.f32 %v1858, %v1859
        %v1861 = vrot.slane %v1860, 1
        %v1862 = vmax.f32 %v1860, %v1861
        %v1863 = vmax.f32 %v1822, %v1823
        %v1864 = vrot.slane %v1863, 4
        %v1865 = vmax.f32 %v1863, %v1864
        %v1866 = vrot.slane %v1865, 2
        %v1867 = vmax.f32 %v1865, %v1866
        %v1868 = vrot.slane %v1867, 1
        %v1869 = vmax.f32 %v1867, %v1868
        %v1870 = vmax.f32 %v1824, %v1825
        %v1871 = vrot.slane %v1870, 4
        %v1872 = vmax.f32 %v1870, %v1871
        %v1873 = vrot.slane %v1872, 2
        %v1874 = vmax.f32 %v1872, %v1873
        %v1875 = vrot.slane %v1874, 1
        %v1876 = vmax.f32 %v1874, %v1875
        %v1877 = vmax.f32 %v1826, %v1827
        %v1878 = vrot.slane %v1877, 4
        %v1879 = vmax.f32 %v1877, %v1878
        %v1880 = vrot.slane %v1879, 2
        %v1881 = vmax.f32 %v1879, %v1880
        %v1882 = vrot.slane %v1881, 1
        %v1883 = vmax.f32 %v1881, %v1882
        %v1884 = vpack.c.bf16 %v1834, %v1834
        %v1885 = vpack.c.bf16 %v1841, %v1841
        %v1886 = vpack.c.bf16 %v1848, %v1848
        %v1887 = vpack.c.bf16 %v1855, %v1855
        %v1888 = vpack.c.bf16 %v1862, %v1862
        %v1889 = vpack.c.bf16 %v1869, %v1869
        %v1890 = vpack.c.bf16 %v1876, %v1876
        %v1891 = vpack.c.bf16 %v1883, %v1883
        %v1892 = vld [vmem:[#allocation8] sm:$0xf]
        %v1893 = vld [vmem:[#allocation8 + $0x4] sm:$0xf]
        %v1894 = vld [vmem:[#allocation8 + $0x8] sm:$0xf]
        %v1895 = vld [vmem:[#allocation8 + $0xc] sm:$0xf]
        %v1896 = vld [vmem:[#allocation8 + $0x10] sm:$0xf]
        %v1897 = vld [vmem:[#allocation8 + $0x14] sm:$0xf]
        %v1898 = vld [vmem:[#allocation8 + $0x18] sm:$0xf]
        %v1899 = vld [vmem:[#allocation8 + $0x1c] sm:$0xf]
        %v1900 = vld [vmem:[#allocation8 + $0x20] sm:$0xf]
        %v1901 = vld [vmem:[#allocation8 + $0x24] sm:$0xf]
        %v1902 = vld [vmem:[#allocation8 + $0x28] sm:$0xf]
        %v1903 = vld [vmem:[#allocation8 + $0x2c] sm:$0xf]
        %v1904 = vld [vmem:[#allocation8 + $0x30] sm:$0xf]
        %v1905 = vld [vmem:[#allocation8 + $0x34] sm:$0xf]
        %v1906 = vld [vmem:[#allocation8 + $0x38] sm:$0xf]
        %v1907 = vld [vmem:[#allocation8 + $0x3c] sm:$0xf]
        %v1908 = vld [vmem:[%s5] sm:$0x1]
        %v1910 = vlaneseq
        %v1911 = vshrl.u32 %v1910, 7
        %v1912 = vsub.s32 0, %v1911
        %v1913 = vrot.slane %v1908, %v1912
        %v1923 = vunpack.c.l.b16 %v1884
        %v1924 = vunpack.c.l.b16 %v1885
        %v1925 = vunpack.c.l.b16 %v1886
        %v1926 = vunpack.c.l.b16 %v1887
        %v1927 = vunpack.c.l.b16 %v1888
        %v1928 = vunpack.c.l.b16 %v1889
        %v1929 = vunpack.c.l.b16 %v1890
        %v1930 = vunpack.c.l.b16 %v1891
        %vm1931 = vcmask 1041409
        %v1932 = vsel %vm1931, %v1924, %v1923
        %vm1933 = vcmask 1042434
        %v1934 = vsel %vm1933, %v1925, %v1932
        %vm1935 = vcmask 1043459
        %v1936 = vsel %vm1935, %v1926, %v1934
        %vm1937 = vcmask 1044484
        %v1938 = vsel %vm1937, %v1927, %v1936
        %vm1939 = vcmask 1045509
        %v1940 = vsel %vm1939, %v1928, %v1938
        %vm1941 = vcmask 1046534
        %v1942 = vsel %vm1941, %v1929, %v1940
        %vm1943 = vcmask 1047559
        %v1944 = vsel %vm1943, %v1930, %v1942
        %v1945 = vpack.c.b16 %v1944, %v1944
        %v1963 = vunpack.c.l.b16 %v1892
        %v1964 = vunpack.c.l.b16 %v1893
        %v1965 = vunpack.c.l.b16 %v1894
        %v1966 = vunpack.c.l.b16 %v1895
        %v1967 = vunpack.c.l.b16 %v1896
        %v1968 = vunpack.c.l.b16 %v1897
        %v1969 = vunpack.c.l.b16 %v1898
        %v1970 = vunpack.c.l.b16 %v1899
        %v1971 = vunpack.c.l.b16 %v1900
        %v1972 = vunpack.c.l.b16 %v1901
        %v1973 = vunpack.c.l.b16 %v1902
        %v1974 = vunpack.c.l.b16 %v1903
        %v1975 = vunpack.c.l.b16 %v1904
        %v1976 = vunpack.c.l.b16 %v1905
        %v1977 = vunpack.c.l.b16 %v1906
        %v1978 = vunpack.c.l.b16 %v1907
        %v1979 = vpack.c.b16 %v1964, %v1963
        %v1980 = vpack.c.b16 %v1966, %v1965
        %v1981 = vpack.c.b16 %v1968, %v1967
        %v1982 = vpack.c.b16 %v1970, %v1969
        %v1983 = vpack.c.b16 %v1972, %v1971
        %v1984 = vpack.c.b16 %v1974, %v1973
        %v1985 = vpack.c.b16 %v1976, %v1975
        %v1986 = vpack.c.b16 %v1978, %v1977
        %1995 = vmatprep.subr.bf16.mxu0 0
        %1996 = vmatpush1.bf16.msra.mxu0 %v1979
        %1997 = vmatprep.subr.bf16.mxu0 0
        %1998 = vmatpush1.bf16.msra.mxu0 %v1980
        %1999 = vmatprep.subr.bf16.mxu0 0
        %2000 = vmatpush1.bf16.msra.mxu0 %v1981
        %2001 = vmatprep.subr.bf16.mxu0 0
        %2002 = vmatpush1.bf16.msra.mxu0 %v1982
        %2003 = vmatprep.subr.bf16.mxu0 0
        %2004 = vmatpush1.bf16.msra.mxu0 %v1983
        %2005 = vmatprep.subr.bf16.mxu0 0
        %2006 = vmatpush1.bf16.msra.mxu0 %v1984
        %2007 = vmatprep.subr.bf16.mxu0 0
        %2008 = vmatpush1.bf16.msra.mxu0 %v1985
        %2009 = vmatprep.subr.bf16.mxu0 0
        %2010 = vmatpush1.bf16.msra.mxu0 %v1986
        %2011 = vmatprep.subr.bf16.mxu0 0
        %2012 = vmatpush1.bf16.msra.mxu0 0
        %2013 = vmatprep.subr.bf16.mxu0 0
        %2014 = vmatpush1.bf16.msra.mxu0 0
        %2015 = vmatprep.subr.bf16.mxu0 0
        %2016 = vmatpush1.bf16.msra.mxu0 0
        %2017 = vmatprep.subr.bf16.mxu0 0
        %2018 = vmatpush1.bf16.msra.mxu0 0
        %2019 = vmatprep.subr.bf16.mxu0 0
        %2020 = vmatpush1.bf16.msra.mxu0 0
        %2021 = vmatprep.subr.bf16.mxu0 0
        %2022 = vmatpush1.bf16.msra.mxu0 0
        %2023 = vmatprep.subr.bf16.mxu0 0
        %2024 = vmatpush1.bf16.msra.mxu0 0
        %2025 = vmatprep.subr.bf16.mxu0 0
        %2026 = vmatpush1.bf16.msra.mxu0 0
        %2027 = vmatprep.mubr.bf16.mxu0 0
        %2028 = vmatmul.mubr.bf16.gmra.mrb[0].mxu0 %v1945
        %v2029 = vpop.f32.mrb[0].mxu0
        %v2030 = vadd.f32 %v1913, %v2029
        %v2031 = vpop.f32.mrb[0].mxu0
        %v2032 = vpop.f32.mrb[0].mxu0
        %v2033 = vpop.f32.mrb[0].mxu0
        %2034 = vdwg.mxu0
        %v2035 = vxor.u32 %v2030, 2147483648
        %v2036 = vmul.f32 %v2035, 1.442695
        %v2037 = vpow.pop %v2036
        %v2038 = vadd.f32 %v2037, 1.0
        %v2039 = vrcp.pop %v2038
        %v2040 = vmul.f32 1.0, %v2039
        %2041 = vst [vmem:[%s314] sm:$0xff] %v2040
        %s2042 = sand.u32 %s164, 1
        %s2043 = scalar_lea.sflag [#allocation4], %s2042
        %s2044 = sand.u32 %s164, 1
        %s2045 = smul.addr %s2044, 8
        %s2046 = scalar_lea.vmem [#allocation10], %s2045
        // Predicated region
        $region61: #{tpu_custom_call.1} parent=43 // pred_check
          %p2047 = pneg %p174
        $region62: #{tpu_custom_call.1} parent=43 // pred_check_branch
          %2049 = sbr.rel (%p2047) target = $region64
        $region63: #{tpu_custom_call.1} parent=43 // pred_region
          %s2051 = ssub.s32 128, 128
          %2052 = vsyncadd %s2043, %s2051
          %s2053 = smul.addr %s25, 128
          %s2054 = scalar_lea.hbm %s6, %s2053
          %s2056 = sshll.u32 %s2046, 4
          %s2057 = int_to_ptr.vmem [resolvable:$true] %s2056
          %2059 = dma.vmem_to_hbm [thread:$0]  %s2057, 128, %s2054, %s2043
        $region64: #{tpu_custom_call.1} parent=43 // pred_fallthru
          _
      $region44: #{tpu_custom_call.1} parent=5 // pred_fallthru
        _
      %p2060 = scmp.le.s32.totalorder 2, %s20
      // Predicated region
      $region65: #{tpu_custom_call.1} parent=5 // pred_check
        %p2061 = pneg %p2060
      $region66: #{tpu_custom_call.1} parent=5 // pred_check_branch
        %2063 = sbr.rel (%p2061) target = $region68
      $region67: #{tpu_custom_call.1} parent=5 // pred_region
        %s2064 = ssub.s32 %s20, 2
        // Predicated region
        $region69: #{tpu_custom_call.1} parent=67 // pred_check
          %p2065 = pneg %p180
        $region70: #{tpu_custom_call.1} parent=67 // pred_check_branch
          %2067 = sbr.rel (%p2065) target = $region72
        $region71: #{tpu_custom_call.1} parent=67 // pred_region
          %s2068 = sand.u32 %s165, 1
          %s2069 = scalar_lea.sflag [#allocation4], %s2068
          %s2070 = sand.u32 %s165, 1
          %s2071 = smul.addr %s2070, 8
          %s2072 = scalar_lea.vmem [#allocation10], %s2071
          %2073 = dma.done %s2069, 128
        $region72: #{tpu_custom_call.1} parent=67 // pred_fallthru
          _
      $region68: #{tpu_custom_call.1} parent=5 // pred_fallthru
        _
    $region6: #{tpu_custom_call.1} parent=1 // loop_footer
      %s24 = sadd.s32 1, %s20
    $region7: #{tpu_custom_call.1} parent=1 // loop_footer_branch
      %19 = sbr.rel target = $region3
    $region8: #{tpu_custom_call.1} parent=1 // loop_exit
      _
    %2074 = vsyncpa [#allocation3], 1
    %s2075 = scalar_lea.sflag [#allocation3], 1
    %2076 = vsyncpa %s2075, 1
    %2077 = vsyncpa [#allocation6], 1
    %2078 = vsyncpa [#allocation9], 1
    %2079 = vsyncpa [#allocation4], 1
    %s2080 = scalar_lea.sflag [#allocation4], 1
    %2081 = vsyncpa %s2080, 1

</llo_original>
